<compile_context>
chip_gen: v5e
topology: v5e:2x2
jax: 0.10.0
libtpu: 0.0.40
codegen_flags: <defaults>
</compile_context>

<pallas_src>
import jax
import jax.numpy as jnp
from jax import lax
from jax.experimental import pallas as pl
from jax.experimental.pallas import tpu as pltpu


def policy_kernel(x_ref, w1_ref, w2_ref, b2_ref, w3_ref, b3_ref, mu_ref):
    # x_ref:   (TB, 8)   f32, column 7 is all-ones (carries fc1's bias)
    # w1_ref:  (256, 8)  bf16, column 7 holds b1
    # w2_ref:  (256,256) bf16
    # b2_ref:  (256, 1)  f32
    # w3_ref:  (1, 256)  bf16
    # b3_ref:  (1, 1)    f32 (SMEM scalar)
    # mu_ref:  (1, TB)   f32 (lane-dense output)
    xb = x_ref[...].astype(jnp.bfloat16)                       # (TB, 8)

    # fc1 + ReLU: contract feature dims of w1 (dim 1) and x (dim 1) -> (256, TB).
    h1 = lax.dot_general(
        w1_ref[...], xb,
        dimension_numbers=(((1,), (1,)), ((), ())),
        preferred_element_type=jnp.float32)
    h1 = jnp.maximum(h1, 0.0)                                  # f32 (256, TB)

    # fc2 + ReLU (bf16 operands, f32 accumulate, f32 bias/ReLU)
    h2 = jnp.dot(w2_ref[...], h1.astype(jnp.bfloat16),
                 preferred_element_type=jnp.float32) + b2_ref[...]
    h2 = jnp.maximum(h2, 0.0)                                  # f32 (256, TB)

    # fc_mu + tanh
    mu = jnp.dot(w3_ref[...], h2.astype(jnp.bfloat16),
                 preferred_element_type=jnp.float32) + b3_ref[0, 0]
    mu_ref[...] = jnp.tanh(mu).astype(mu_ref.dtype)            # (1, TB)


def _round_up(n, m):
    return ((n + m - 1) // m) * m


def _choose_tile(batch, max_tb=2048):
    # Keep tiles a multiple of 256 and try to get >= 2 grid points so the
    # "parallel" batch axis can be sharded across both TensorCores on v7x.
    return min(max_tb, max(256, _round_up(pl.cdiv(batch, 2), 256)))


def policy_forward(x, kparams, tb=None):
    """x: (B, 7) f32 -> (B, 1) f32."""
    w1k, w2k, b2k, w3k, b3k = kparams
    B = x.shape[0]
    if tb is None:
        tb = _choose_tile(B)
    assert tb % 128 == 0, "tb must be a multiple of 128 (lane-dense output)"
    num_tiles = pl.cdiv(B, tb)
    Bp = num_tiles * tb

    # Append an all-ones 8th feature column (carries fc1's bias inside w1k)
    # and explicitly zero-pad the batch rows so padded lanes are deterministic.
    xb = jnp.concatenate(
        [x.astype(jnp.float32), jnp.ones((B, 1), jnp.float32)], axis=1)   # (B, 8)
    xb = jnp.pad(xb, ((0, Bp - B), (0, 0)))                               # (Bp, 8)

    out = pl.pallas_call(
        policy_kernel,
        out_shape=jax.ShapeDtypeStruct((1, Bp), jnp.float32),
        grid=(num_tiles,),
        in_specs=[
            pl.BlockSpec((tb, 8), lambda i: (i, 0)),              # x tile (pipelined)
            pl.BlockSpec((256, 8), lambda i: (0, 0)),             # w1 (+b1), resident
            pl.BlockSpec((256, 256), lambda i: (0, 0)),           # w2, resident
            pl.BlockSpec((256, 1), lambda i: (0, 0)),             # b2, resident
            pl.BlockSpec((1, 256), lambda i: (0, 0)),             # w3, resident
            pl.BlockSpec(memory_space=pltpu.MemorySpace.SMEM),    # b3 scalar
        ],
        out_specs=pl.BlockSpec((1, tb), lambda i: (0, i)),
        compiler_params=pltpu.CompilerParams(
            dimension_semantics=("parallel",)),
    )(xb, w1k, w2k, b2k, w3k, b3k)

    return out[:, :B].T                                           # (B, 1)


def init_params(key):
    # PyTorch nn.Linear default init: U(-1/sqrt(fan_in), 1/sqrt(fan_in)),
    # stored in PyTorch layout: W (out, in), b (out,).
    def linear(key, fan_in, fan_out):
        kw, kb = jax.random.split(key)
        bound = 1.0 / jnp.sqrt(jnp.float32(fan_in))
        w = jax.random.uniform(kw, (fan_out, fan_in), jnp.float32, -bound, bound)
        b = jax.random.uniform(kb, (fan_out,), jnp.float32, -bound, bound)
        return w, b

    k1, k2, k3 = jax.random.split(key, 3)
    w1, b1 = linear(k1, 7, 256)
    w2, b2 = linear(k2, 256, 256)
    w3, b3 = linear(k3, 256, 1)
    return (w1, b1, w2, b2, w3, b3)


def prepare_kernel_params(params):
    w1, b1, w2, b2, w3, b3 = params
    w1k = jnp.concatenate([w1, b1[:, None]], axis=1).astype(jnp.bfloat16)  # (256, 8)
    w2k = w2.astype(jnp.bfloat16)                                          # (256, 256)
    b2k = b2.reshape(256, 1).astype(jnp.float32)                           # (256, 1)
    w3k = w3.astype(jnp.bfloat16)                                          # (1, 256)
    b3k = b3.reshape(1, 1).astype(jnp.float32)                             # (1, 1)
    return (w1k, w2k, b2k, w3k, b3k)


def reference_forward(x, kparams):
    # Pure-JAX reference mirroring the kernel's precision policy exactly:
    # bf16 dot operands, f32 accumulation, f32 elementwise.
    w1k, w2k, b2k, w3k, b3k = kparams
    xb = jnp.concatenate(
        [x.astype(jnp.float32), jnp.ones((x.shape[0], 1), jnp.float32)], axis=1)
    h1 = jnp.dot(xb.astype(jnp.bfloat16), w1k.T,
                 preferred_element_type=jnp.float32)
    h1 = jnp.maximum(h1, 0.0)
    h2 = jnp.dot(h1.astype(jnp.bfloat16), w2k.T,
                 preferred_element_type=jnp.float32) + b2k.reshape(1, -1)
    h2 = jnp.maximum(h2, 0.0)
    mu = jnp.dot(h2.astype(jnp.bfloat16), w3k.T,
                 preferred_element_type=jnp.float32) + b3k.reshape(1, -1)
    return jnp.tanh(mu)


if __name__ == "__main__":
    key = jax.random.PRNGKey(0)
    kp, kx = jax.random.split(key)
    kparams = prepare_kernel_params(init_params(kp))

    # Multi-tile + padded-batch case (auto tile -> tb=256, 2 grid points).
    B = 300
    x = jax.random.normal(kx, (B, 7), jnp.float32)
    mu = jax.block_until_ready(policy_forward(x, kparams))
    ref = reference_forward(x, kparams)
    assert mu.shape == (B, 1)
    assert jnp.allclose(mu, ref, atol=2e-3, rtol=2e-3)

    # Tiny-batch case (single tile, heavy padding).
    x_small = x[:8]
    mu_small = jax.block_until_ready(policy_forward(x_small, kparams))
    ref_small = reference_forward(x_small, kparams)
    assert mu_small.shape == (8, 1)
    assert jnp.allclose(mu_small, ref_small, atol=2e-3, rtol=2e-3)

    # Explicit large-tile path (as used for big replay-buffer batches).
    mu_big_tile = jax.block_until_ready(policy_forward(x, kparams, tb=2048))
    assert jnp.allclose(mu_big_tile, ref, atol=2e-3, rtol=2e-3)

    print("KERNEL_OK")
</pallas_src>

<mosaic_0001>
module attributes {stable_mosaic.version = 11 : i64} {
  func.func @policy_kernel(%arg0: i32, %arg1: memref<256x8xf32, #tpu.memory_space<vmem>>, %arg2: memref<256x8xbf16, #tpu.memory_space<vmem>>, %arg3: memref<256x256xbf16, #tpu.memory_space<vmem>>, %arg4: memref<256x1xf32, #tpu.memory_space<vmem>>, %arg5: memref<1x256xbf16, #tpu.memory_space<vmem>>, %arg6: memref<1x1xf32, #tpu.memory_space<smem>>, %arg7: memref<1x256xf32, #tpu.memory_space<vmem>>) attributes {dimension_semantics = [#tpu.dimension_semantics<parallel>], iteration_bounds = array<i64: 2>, scalar_prefetch = 0 : i64, scratch_operands = 0 : i64, tpu.core_type = #tpu.core_type<tc>, window_params = [{transform_indices = @transform_0, window_bounds = array<i64: 256, 8>}, {pipeline_mode = #tpu.pipeline_mode<synchronous>, transform_indices = @transform_1, window_bounds = array<i64: 256, 8>}, {pipeline_mode = #tpu.pipeline_mode<synchronous>, transform_indices = @transform_2, window_bounds = array<i64: 256, 256>}, {pipeline_mode = #tpu.pipeline_mode<synchronous>, transform_indices = @transform_3, window_bounds = array<i64: 256, 1>}, {pipeline_mode = #tpu.pipeline_mode<synchronous>, transform_indices = @transform_4, window_bounds = array<i64: 1, 256>}, {transform_indices = @transform_5, window_bounds = array<i64: 1, 1>}, {transform_indices = @transform_6, window_bounds = array<i64: 1, 256>}]} {
    %c0 = arith.constant 0 : index
    %c0_0 = arith.constant 0 : index
    %0 = vector.load %arg1[%c0, %c0_0] : memref<256x8xf32, #tpu.memory_space<vmem>>, vector<256x8xf32>
    %1 = arith.truncf %0 : vector<256x8xf32> to vector<256x8xbf16>
    %c0_1 = arith.constant 0 : index
    %c0_2 = arith.constant 0 : index
    %2 = vector.load %arg2[%c0_1, %c0_2] : memref<256x8xbf16, #tpu.memory_space<vmem>>, vector<256x8xbf16>
    %cst = arith.constant dense<0.000000e+00> : vector<256x256xf32>
    %3 = tpu.matmul %2, %1, %cst {dimension_numbers = #tpu.dot_dimension_numbers<[1], [1], [0], [0], [0, 0, 1, 0], [], []>} : vector<256x8xbf16>, vector<256x8xbf16>, vector<256x256xf32> -> vector<256x256xf32>
    %cst_3 = arith.constant 0.000000e+00 : f32
    %4 = vector.broadcast %cst_3 : f32 to vector<256x256xf32>
    %5 = arith.maximumf %3, %4 : vector<256x256xf32>
    %c0_4 = arith.constant 0 : index
    %c0_5 = arith.constant 0 : index
    %6 = vector.load %arg3[%c0_4, %c0_5] : memref<256x256xbf16, #tpu.memory_space<vmem>>, vector<256x256xbf16>
    %7 = arith.truncf %5 : vector<256x256xf32> to vector<256x256xbf16>
    %cst_6 = arith.constant dense<0.000000e+00> : vector<256x256xf32>
    %8 = tpu.matmul %6, %7, %cst_6 {dimension_numbers = #tpu.dot_dimension_numbers<[1], [0], [0], [1], [0, 0, 1, 1], [], []>} : vector<256x256xbf16>, vector<256x256xbf16>, vector<256x256xf32> -> vector<256x256xf32>
    %c0_7 = arith.constant 0 : index
    %c0_8 = arith.constant 0 : index
    %9 = vector.load %arg4[%c0_7, %c0_8] : memref<256x1xf32, #tpu.memory_space<vmem>>, vector<256x1xf32>
    %10 = vector.broadcast %9 : vector<256x1xf32> to vector<256x256xf32>
    %11 = arith.addf %8, %10 : vector<256x256xf32>
    %cst_9 = arith.constant 0.000000e+00 : f32
    %12 = vector.broadcast %cst_9 : f32 to vector<256x256xf32>
    %13 = arith.maximumf %11, %12 : vector<256x256xf32>
    %c0_10 = arith.constant 0 : index
    %c0_11 = arith.constant 0 : index
    %14 = vector.load %arg5[%c0_10, %c0_11] : memref<1x256xbf16, #tpu.memory_space<vmem>>, vector<1x256xbf16>
    %15 = arith.truncf %13 : vector<256x256xf32> to vector<256x256xbf16>
    %cst_12 = arith.constant dense<0.000000e+00> : vector<1x256xf32>
    %16 = tpu.matmul %14, %15, %cst_12 {dimension_numbers = #tpu.dot_dimension_numbers<[1], [0], [0], [1], [0, 0, 1, 1], [], []>} : vector<1x256xbf16>, vector<256x256xbf16>, vector<1x256xf32> -> vector<1x256xf32>
    %c0_13 = arith.constant 0 : index
    %c0_14 = arith.constant 0 : index
    %17 = memref.load %arg6[%c0_13, %c0_14] : memref<1x1xf32, #tpu.memory_space<smem>>
    %18 = vector.broadcast %17 : f32 to vector<1x256xf32>
    %19 = arith.addf %16, %18 : vector<1x256xf32>
    %20 = math.tanh %19 : vector<1x256xf32>
    %c0_15 = arith.constant 0 : index
    %c0_16 = arith.constant 0 : index
    %21 = vector.load %arg7[%c0_15, %c0_16] : memref<1x256xf32, #tpu.memory_space<vmem>>, vector<1x256xf32>
    tpu.vector_store %arg7[%c0_15, %c0_16], %20 {strides = array<i32>} : memref<1x256xf32, #tpu.memory_space<vmem>>, vector<1x256xf32>,
    return
  }
  func.func @transform_0(%arg0: i32) -> (i32, i32) {
    %c0_i32 = arith.constant 0 : i32
    %c0_i32_0 = arith.constant 0 : i32
    return %arg0, %c0_i32 : i32, i32
  }
  func.func @transform_1(%arg0: i32) -> (i32, i32) {
    %c0_i32 = arith.constant 0 : i32
    %c0_i32_0 = arith.constant 0 : i32
    %c0_i32_1 = arith.constant 0 : i32
    return %c0_i32, %c0_i32_0 : i32, i32
  }
  func.func @transform_2(%arg0: i32) -> (i32, i32) {
    %c0_i32 = arith.constant 0 : i32
    %c0_i32_0 = arith.constant 0 : i32
    %c0_i32_1 = arith.constant 0 : i32
    return %c0_i32, %c0_i32_0 : i32, i32
  }
  func.func @transform_3(%arg0: i32) -> (i32, i32) {
    %c0_i32 = arith.constant 0 : i32
    %c0_i32_0 = arith.constant 0 : i32
    %c0_i32_1 = arith.constant 0 : i32
    return %c0_i32, %c0_i32_0 : i32, i32
  }
  func.func @transform_4(%arg0: i32) -> (i32, i32) {
    %c0_i32 = arith.constant 0 : i32
    %c0_i32_0 = arith.constant 0 : i32
    %c0_i32_1 = arith.constant 0 : i32
    return %c0_i32, %c0_i32_0 : i32, i32
  }
  func.func @transform_5(%arg0: i32) -> (i32, i32) {
    %c0_i32 = arith.constant 0 : i32
    %c0_i32_0 = arith.constant 0 : i32
    %c0_i32_1 = arith.constant 0 : i32
    return %c0_i32, %c0_i32_0 : i32, i32
  }
  func.func @transform_6(%arg0: i32) -> (i32, i32) {
    %c0_i32 = arith.constant 0 : i32
    %c0_i32_0 = arith.constant 0 : i32
    return %c0_i32, %arg0 : i32, i32
  }
}

</mosaic_0001>

<llo_original>
// kernel: tpu_custom_call.1
$region0: #{tpu_custom_call.1}
  #allocation0 [shape = 'u32[]', space=smem, size = 0x4, offset = 0x4, fixed_abs, tag = 'smem constant byte address 0x4 - core index']
  #allocation1 [shape = 'u32[72,128]{1,0:T(1,128)}', space=vmem, size = 0x9000, scoped, tag = 'internal scratch']
  #allocation2 [shape = 'f32[1,1]{1,0:T(1,128)S(6)}', space=smem, size = 0x200, scoped, tag = 'scoped memory for tpu_custom_call.1']
  %s0 = inlined_call_operand.vmem [shape: f32[512,8], index: 0, kind: input, shape index: {}]
  %s1 = inlined_call_operand.vmem [shape: bf16[256,8], index: 1, kind: input, shape index: {}]
  %s2 = inlined_call_operand.vmem [shape: bf16[256,256], index: 2, kind: input, shape index: {}]
  %s3 = inlined_call_operand.vmem [shape: f32[256,1], index: 3, kind: input, shape index: {}]
  %s4 = inlined_call_operand.vmem [shape: bf16[1,256], index: 4, kind: input, shape index: {}]
  %s5 = inlined_call_operand.<no memory space> [shape: f32[1,1], index: 5, kind: input, shape index: {}]
  %s6 = inlined_call_operand.hbm [shape: f32[1,512], index: 6, kind: output, shape index: {}]
  %s7 = sld [smem:[#allocation0]]
  $region57: #{tpu_custom_call.1} parent=0
    _
  %s9 = ssub.s32 1, %s7
  %s10 = scalar_select 0, %s9, %s7
  %11 = sst [smem:[#allocation2]] %s5
  $region1: #{tpu_custom_call.1} parent=0
    #allocation3 [shape = 'u8[2048]{0}', space=vmem, size = 0x800, scoped, tag = 'output window, operand 0']
    #allocation4 [shape = 's32[2]{0}', space=sflag, size = 0x8, scoped, tag = 'scoped memory for tpu_custom_call.1']
    %12 = vsyncpa [#allocation4], 0
    %s13 = scalar_lea.sflag [#allocation4], 1
    %14 = vsyncpa %s13, 0
    loop: start=0, step=1, limit=4
    $region2: #{tpu_custom_call.1} parent=1 // loop_pre_header
      _
    $region3: #{tpu_custom_call.1} parent=1 // loop_header
      %s16 = sphi 0, %s20
      %p17 = scmp.ge.s32.totalorder %s16, 4
      %s26 = sphi 0, %s28
      %s29 = sphi 0, %s26
      %s30 = sphi 0, %s29
      %s46 = sphi 0, %s30
      %s50 = sphi 0, %s50
      %s52 = sphi 0, %s50
      %s53 = sphi 0, %s52
      %s67 = sphi 0, %s53
      %s71 = sphi 0, %s71
      %s73 = sphi 0, %s71
      %s74 = sphi 0, %s73
      %s88 = sphi 0, %s74
      %s92 = sphi 0, %s92
      %s94 = sphi 0, %s92
      %s95 = sphi 0, %s94
      %s109 = sphi 0, %s95
      %s113 = sphi 0, %s113
      %s115 = sphi 0, %s113
      %s116 = sphi 0, %s115
      %s130 = sphi 0, %s116
      %s134 = sphi 0, %s134
      %s136 = sphi 0, %s134
      %s137 = sphi 0, %s136
      %s151 = sphi 0, %s137
      %s157 = sphi 0, %s159
      %s160 = sphi 0, %s157
      %s161 = sphi 0, %s160
      %s177 = sphi 0, %s161
    $region4: #{tpu_custom_call.1} parent=1 // loop_header_branch
      %19 = sbr.rel (%p17) target = $region8
    $region5: #{tpu_custom_call.1} parent=1 // loop_body
      %s21 = ssub.s32 %s16, 1
      %s22 = ssub.s32 %s16, 2
      %s23 = sadd.s32 %s16, 1
      %s24 = ssub.s32 %s16, %s23
      %p25 = scmp.eq.s32.totalorder %s24, 0
      %s27 = sadd.s32 %s26, 1
      %s28 = scalar_select %p25, %s26, %s27
      %p31 = pneg %p25
      %p32 = scmp.eq.s32.totalorder %s16, 1
      %p33 = por %p31, %p32
      %p34 = scmp.ne.s32.totalorder %s26, %s29
      %p35 = scmp.eq.s32.totalorder %s16, 0
      %p36 = por %p34, %p35
      %p37 = scmp.ne.s32.totalorder %s26, %s29
      %p38 = scmp.eq.s32.totalorder %s21, 1
      %p39 = por %p37, %p38
      %p40 = scmp.ne.s32.totalorder %s29, %s30
      %p41 = scmp.eq.s32.totalorder %s21, 0
      %p42 = por %p40, %p41
      %p43 = scmp.ne.s32.totalorder %s29, %s30
      %p44 = scmp.eq.s32.totalorder %s22, 1
      %p45 = por %p43, %p44
      %p47 = scmp.ne.s32.totalorder %s30, %s46
      %p48 = scmp.eq.s32.totalorder %s22, 0
      %p49 = por %p47, %p48
      %s51 = sadd.s32 %s50, 1
      %p54 = scmp.eq.s32.totalorder %s16, 1
      %p55 = scmp.ne.s32.totalorder %s50, %s52
      %p56 = scmp.eq.s32.totalorder %s16, 0
      %p57 = por %p55, %p56
      %p58 = scmp.ne.s32.totalorder %s50, %s52
      %p59 = scmp.eq.s32.totalorder %s21, 1
      %p60 = por %p58, %p59
      %p61 = scmp.ne.s32.totalorder %s52, %s53
      %p62 = scmp.eq.s32.totalorder %s21, 0
      %p63 = por %p61, %p62
      %p64 = scmp.ne.s32.totalorder %s52, %s53
      %p65 = scmp.eq.s32.totalorder %s22, 1
      %p66 = por %p64, %p65
      %p68 = scmp.ne.s32.totalorder %s53, %s67
      %p69 = scmp.eq.s32.totalorder %s22, 0
      %p70 = por %p68, %p69
      %s72 = sadd.s32 %s71, 1
      %p75 = scmp.eq.s32.totalorder %s16, 1
      %p76 = scmp.ne.s32.totalorder %s71, %s73
      %p77 = scmp.eq.s32.totalorder %s16, 0
      %p78 = por %p76, %p77
      %p79 = scmp.ne.s32.totalorder %s71, %s73
      %p80 = scmp.eq.s32.totalorder %s21, 1
      %p81 = por %p79, %p80
      %p82 = scmp.ne.s32.totalorder %s73, %s74
      %p83 = scmp.eq.s32.totalorder %s21, 0
      %p84 = por %p82, %p83
      %p85 = scmp.ne.s32.totalorder %s73, %s74
      %p86 = scmp.eq.s32.totalorder %s22, 1
      %p87 = por %p85, %p86
      %p89 = scmp.ne.s32.totalorder %s74, %s88
      %p90 = scmp.eq.s32.totalorder %s22, 0
      %p91 = por %p89, %p90
      %s93 = sadd.s32 %s92, 1
      %p96 = scmp.eq.s32.totalorder %s16, 1
      %p97 = scmp.ne.s32.totalorder %s92, %s94
      %p98 = scmp.eq.s32.totalorder %s16, 0
      %p99 = por %p97, %p98
      %p100 = scmp.ne.s32.totalorder %s92, %s94
      %p101 = scmp.eq.s32.totalorder %s21, 1
      %p102 = por %p100, %p101
      %p103 = scmp.ne.s32.totalorder %s94, %s95
      %p104 = scmp.eq.s32.totalorder %s21, 0
      %p105 = por %p103, %p104
      %p106 = scmp.ne.s32.totalorder %s94, %s95
      %p107 = scmp.eq.s32.totalorder %s22, 1
      %p108 = por %p106, %p107
      %p110 = scmp.ne.s32.totalorder %s95, %s109
      %p111 = scmp.eq.s32.totalorder %s22, 0
      %p112 = por %p110, %p111
      %s114 = sadd.s32 %s113, 1
      %p117 = scmp.eq.s32.totalorder %s16, 1
      %p118 = scmp.ne.s32.totalorder %s113, %s115
      %p119 = scmp.eq.s32.totalorder %s16, 0
      %p120 = por %p118, %p119
      %p121 = scmp.ne.s32.totalorder %s113, %s115
      %p122 = scmp.eq.s32.totalorder %s21, 1
      %p123 = por %p121, %p122
      %p124 = scmp.ne.s32.totalorder %s115, %s116
      %p125 = scmp.eq.s32.totalorder %s21, 0
      %p126 = por %p124, %p125
      %p127 = scmp.ne.s32.totalorder %s115, %s116
      %p128 = scmp.eq.s32.totalorder %s22, 1
      %p129 = por %p127, %p128
      %p131 = scmp.ne.s32.totalorder %s116, %s130
      %p132 = scmp.eq.s32.totalorder %s22, 0
      %p133 = por %p131, %p132
      %s135 = sadd.s32 %s134, 1
      %p138 = scmp.eq.s32.totalorder %s16, 1
      %p139 = scmp.ne.s32.totalorder %s134, %s136
      %p140 = scmp.eq.s32.totalorder %s16, 0
      %p141 = por %p139, %p140
      %p142 = scmp.ne.s32.totalorder %s134, %s136
      %p143 = scmp.eq.s32.totalorder %s21, 1
      %p144 = por %p142, %p143
      %p145 = scmp.ne.s32.totalorder %s136, %s137
      %p146 = scmp.eq.s32.totalorder %s21, 0
      %p147 = por %p145, %p146
      %p148 = scmp.ne.s32.totalorder %s136, %s137
      %p149 = scmp.eq.s32.totalorder %s22, 1
      %p150 = por %p148, %p149
      %p152 = scmp.ne.s32.totalorder %s137, %s151
      %p153 = scmp.eq.s32.totalorder %s22, 0
      %p154 = por %p152, %p153
      %s155 = ssub.s32 %s16, %s23
      %p156 = scmp.eq.s32.totalorder %s155, 0
      %s158 = sadd.s32 %s157, 1
      %s159 = scalar_select %p156, %s157, %s158
      %p162 = pneg %p156
      %p163 = scmp.eq.s32.totalorder %s16, 1
      %p164 = por %p162, %p163
      %p165 = scmp.ne.s32.totalorder %s157, %s160
      %p166 = scmp.eq.s32.totalorder %s16, 0
      %p167 = por %p165, %p166
      %p168 = scmp.ne.s32.totalorder %s157, %s160
      %p169 = scmp.eq.s32.totalorder %s21, 1
      %p170 = por %p168, %p169
      %p171 = scmp.ne.s32.totalorder %s160, %s161
      %p172 = scmp.eq.s32.totalorder %s21, 0
      %p173 = por %p171, %p172
      %p174 = scmp.ne.s32.totalorder %s160, %s161
      %p175 = scmp.eq.s32.totalorder %s22, 1
      %p176 = por %p174, %p175
      %p178 = scmp.ne.s32.totalorder %s161, %s177
      %p179 = scmp.eq.s32.totalorder %s22, 0
      %p180 = por %p178, %p179
      %p181 = scmp.le.s32.totalorder 1, %s16
      %p182 = scmp.lt.s32.totalorder %s16, 3
      %p183 = pnand %p181, %p182
      %p184 = pneg %p183
      // Predicated region
      $region9: #{tpu_custom_call.1} parent=5 // pred_check
        _
      $region10: #{tpu_custom_call.1} parent=5 // pred_check_branch
        %186 = sbr.rel (%p183) target = $region12
      $region11: #{tpu_custom_call.1} parent=5 // pred_region
        %s187 = ssub.s32 %s16, 1
        // Predicated region
        $region13: #{tpu_custom_call.1} parent=11 // pred_check
          %p188 = pneg %p63
        $region14: #{tpu_custom_call.1} parent=11 // pred_check_branch
          %190 = sbr.rel (%p188) target = $region16
        $region15: #{tpu_custom_call.1} parent=11 // pred_region
          _
        $region16: #{tpu_custom_call.1} parent=11 // pred_fallthru
          _
        // Predicated region
        $region17: #{tpu_custom_call.1} parent=11 // pred_check
          %p191 = pneg %p84
        $region18: #{tpu_custom_call.1} parent=11 // pred_check_branch
          %193 = sbr.rel (%p191) target = $region20
        $region19: #{tpu_custom_call.1} parent=11 // pred_region
          _
        $region20: #{tpu_custom_call.1} parent=11 // pred_fallthru
          _
        // Predicated region
        $region21: #{tpu_custom_call.1} parent=11 // pred_check
          %p194 = pneg %p105
        $region22: #{tpu_custom_call.1} parent=11 // pred_check_branch
          %196 = sbr.rel (%p194) target = $region24
        $region23: #{tpu_custom_call.1} parent=11 // pred_region
          _
        $region24: #{tpu_custom_call.1} parent=11 // pred_fallthru
          _
        // Predicated region
        $region25: #{tpu_custom_call.1} parent=11 // pred_check
          %p197 = pneg %p126
        $region26: #{tpu_custom_call.1} parent=11 // pred_check_branch
          %199 = sbr.rel (%p197) target = $region28
        $region27: #{tpu_custom_call.1} parent=11 // pred_region
          _
        $region28: #{tpu_custom_call.1} parent=11 // pred_fallthru
          _
        // Predicated region
        $region29: #{tpu_custom_call.1} parent=11 // pred_check
          %p200 = pneg %p147
        $region30: #{tpu_custom_call.1} parent=11 // pred_check_branch
          %202 = sbr.rel (%p200) target = $region32
        $region31: #{tpu_custom_call.1} parent=11 // pred_region
          _
        $region32: #{tpu_custom_call.1} parent=11 // pred_fallthru
          _
      $region12: #{tpu_custom_call.1} parent=5 // pred_fallthru
        _
      %p203 = scmp.lt.s32.totalorder %s16, 2
      // Predicated region
      $region33: #{tpu_custom_call.1} parent=5 // pred_check
        %p204 = pneg %p203
      $region34: #{tpu_custom_call.1} parent=5 // pred_check_branch
        %206 = sbr.rel (%p204) target = $region36
      $region35: #{tpu_custom_call.1} parent=5 // pred_region
        // Predicated region
        $region37: #{tpu_custom_call.1} parent=35 // pred_check
          %p207 = pneg %p36
        $region38: #{tpu_custom_call.1} parent=35 // pred_check_branch
          %209 = sbr.rel (%p207) target = $region40
        $region39: #{tpu_custom_call.1} parent=35 // pred_region
          %s210 = smul.u32 32, %s16
          %p211 = scmp.lt.s32.totalorder %s210, 63
          %s212 = scalar_select %p211, %s210, 63
          %s213 = smul.addr %s212, 8
          %s214 = scalar_lea.vmem %s0, %s213
          %s215 = smul.u32 32, %s16
        $region40: #{tpu_custom_call.1} parent=35 // pred_fallthru
          _
      $region36: #{tpu_custom_call.1} parent=5 // pred_fallthru
        _
      %p216 = scmp.le.s32.totalorder 1, %s16
      %p217 = scmp.lt.s32.totalorder %s16, 3
      %p218 = pnand %p216, %p217
      %p219 = pneg %p218
      // Predicated region
      $region41: #{tpu_custom_call.1} parent=5 // pred_check
        _
      $region42: #{tpu_custom_call.1} parent=5 // pred_check_branch
        %221 = sbr.rel (%p218) target = $region44
      $region43: #{tpu_custom_call.1} parent=5 // pred_region
        %s222 = ssub.s32 %s16, 1
        %s223 = smul.u32 32, %s21
        %p224 = scmp.lt.s32.totalorder %s223, 63
        %s225 = scalar_select %p224, %s223, 63
        %s226 = smul.addr %s225, 8
        %s227 = scalar_lea.vmem %s0, %s226
        %p228 = pneg %p42
        %p229 = pneg %p39
        %p230 = pneg %p63
        %p231 = pneg %p60
        %p232 = pneg %p84
        %p233 = pneg %p81
        %p234 = pneg %p105
        %p235 = pneg %p102
        %p236 = pneg %p126
        %p237 = pneg %p123
        %p238 = pneg %p147
        %p239 = pneg %p144
        %p240 = pneg %p173
        %p241 = pneg %p170
        %s242 = sand.u32 %s160, 1
        %s243 = scalar_lea.sflag [#allocation4], %s242
        %s244 = sand.u32 %s160, 1
        %s245 = smul.addr %s244, 2
        %s246 = scalar_lea.vmem [#allocation3], %s245
        %s247 = smul.u32 32, %s21
        %p248 = scmp.lt.s32.totalorder %s247, 63
        %s249 = scalar_select %p248, %s247, 63
        %s250 = smul.addr %s249, 8
        %s251 = scalar_lea.vmem %s0, %s250
        %s252 = smul.u32 32, %s21
        %s253 = smul.u32 2, %s21
        %v254 = vld [vmem:[%s251] sm:$0xff]
        %v255 = vld [vmem:[%s251 + $0x8] sm:$0xff]
        %v256 = vld [vmem:[%s251 + $0x10] sm:$0xff]
        %v257 = vld [vmem:[%s251 + $0x18] sm:$0xff]
        %v258 = vld [vmem:[%s251 + $0x20] sm:$0xff]
        %v259 = vld [vmem:[%s251 + $0x28] sm:$0xff]
        %v260 = vld [vmem:[%s251 + $0x30] sm:$0xff]
        %v261 = vld [vmem:[%s251 + $0x38] sm:$0xff]
        %v262 = vld [vmem:[%s251 + $0x40] sm:$0xff]
        %v263 = vld [vmem:[%s251 + $0x48] sm:$0xff]
        %v264 = vld [vmem:[%s251 + $0x50] sm:$0xff]
        %v265 = vld [vmem:[%s251 + $0x58] sm:$0xff]
        %v266 = vld [vmem:[%s251 + $0x60] sm:$0xff]
        %v267 = vld [vmem:[%s251 + $0x68] sm:$0xff]
        %v268 = vld [vmem:[%s251 + $0x70] sm:$0xff]
        %v269 = vld [vmem:[%s251 + $0x78] sm:$0xff]
        %v270 = vld [vmem:[%s251 + $0x80] sm:$0xff]
        %v271 = vld [vmem:[%s251 + $0x88] sm:$0xff]
        %v272 = vld [vmem:[%s251 + $0x90] sm:$0xff]
        %v273 = vld [vmem:[%s251 + $0x98] sm:$0xff]
        %v274 = vld [vmem:[%s251 + $0xa0] sm:$0xff]
        %v275 = vld [vmem:[%s251 + $0xa8] sm:$0xff]
        %v276 = vld [vmem:[%s251 + $0xb0] sm:$0xff]
        %v277 = vld [vmem:[%s251 + $0xb8] sm:$0xff]
        %v278 = vld [vmem:[%s251 + $0xc0] sm:$0xff]
        %v279 = vld [vmem:[%s251 + $0xc8] sm:$0xff]
        %v280 = vld [vmem:[%s251 + $0xd0] sm:$0xff]
        %v281 = vld [vmem:[%s251 + $0xd8] sm:$0xff]
        %v282 = vld [vmem:[%s251 + $0xe0] sm:$0xff]
        %v283 = vld [vmem:[%s251 + $0xe8] sm:$0xff]
        %v284 = vld [vmem:[%s251 + $0xf0] sm:$0xff]
        %v285 = vld [vmem:[%s251 + $0xf8] sm:$0xff]
        %v286 = vpack.c.bf16 %v255, %v254
        %v287 = vpack.c.bf16 %v257, %v256
        %v288 = vpack.c.bf16 %v259, %v258
        %v289 = vpack.c.bf16 %v261, %v260
        %v290 = vpack.c.bf16 %v263, %v262
        %v291 = vpack.c.bf16 %v265, %v264
        %v292 = vpack.c.bf16 %v267, %v266
        %v293 = vpack.c.bf16 %v269, %v268
        %v294 = vpack.c.bf16 %v271, %v270
        %v295 = vpack.c.bf16 %v273, %v272
        %v296 = vpack.c.bf16 %v275, %v274
        %v297 = vpack.c.bf16 %v277, %v276
        %v298 = vpack.c.bf16 %v279, %v278
        %v299 = vpack.c.bf16 %v281, %v280
        %v300 = vpack.c.bf16 %v283, %v282
        %v301 = vpack.c.bf16 %v285, %v284
        %v302 = vld [vmem:[%s1] sm:$0xf]
        %v303 = vld [vmem:[%s1 + $0x4] sm:$0xf]
        %v304 = vld [vmem:[%s1 + $0x8] sm:$0xf]
        %v305 = vld [vmem:[%s1 + $0xc] sm:$0xf]
        %v306 = vld [vmem:[%s1 + $0x10] sm:$0xf]
        %v307 = vld [vmem:[%s1 + $0x14] sm:$0xf]
        %v308 = vld [vmem:[%s1 + $0x18] sm:$0xf]
        %v309 = vld [vmem:[%s1 + $0x1c] sm:$0xf]
        %v310 = vld [vmem:[%s1 + $0x20] sm:$0xf]
        %v311 = vld [vmem:[%s1 + $0x24] sm:$0xf]
        %v312 = vld [vmem:[%s1 + $0x28] sm:$0xf]
        %v313 = vld [vmem:[%s1 + $0x2c] sm:$0xf]
        %v314 = vld [vmem:[%s1 + $0x30] sm:$0xf]
        %v315 = vld [vmem:[%s1 + $0x34] sm:$0xf]
        %v316 = vld [vmem:[%s1 + $0x38] sm:$0xf]
        %v317 = vld [vmem:[%s1 + $0x3c] sm:$0xf]
        %v318 = vld [vmem:[%s1 + $0x40] sm:$0xf]
        %v319 = vld [vmem:[%s1 + $0x44] sm:$0xf]
        %v320 = vld [vmem:[%s1 + $0x48] sm:$0xf]
        %v321 = vld [vmem:[%s1 + $0x4c] sm:$0xf]
        %v322 = vld [vmem:[%s1 + $0x50] sm:$0xf]
        %v323 = vld [vmem:[%s1 + $0x54] sm:$0xf]
        %v324 = vld [vmem:[%s1 + $0x58] sm:$0xf]
        %v325 = vld [vmem:[%s1 + $0x5c] sm:$0xf]
        %v326 = vld [vmem:[%s1 + $0x60] sm:$0xf]
        %v327 = vld [vmem:[%s1 + $0x64] sm:$0xf]
        %v328 = vld [vmem:[%s1 + $0x68] sm:$0xf]
        %v329 = vld [vmem:[%s1 + $0x6c] sm:$0xf]
        %v330 = vld [vmem:[%s1 + $0x70] sm:$0xf]
        %v331 = vld [vmem:[%s1 + $0x74] sm:$0xf]
        %v332 = vld [vmem:[%s1 + $0x78] sm:$0xf]
        %v333 = vld [vmem:[%s1 + $0x7c] sm:$0xf]
        %v366 = vunpack.c.l.b16 %v302
        %v367 = vunpack.c.l.b16 %v303
        %v368 = vunpack.c.l.b16 %v304
        %v369 = vunpack.c.l.b16 %v305
        %v370 = vunpack.c.l.b16 %v306
        %v371 = vunpack.c.l.b16 %v307
        %v372 = vunpack.c.l.b16 %v308
        %v373 = vunpack.c.l.b16 %v309
        %v374 = vunpack.c.l.b16 %v310
        %v375 = vunpack.c.l.b16 %v311
        %v376 = vunpack.c.l.b16 %v312
        %v377 = vunpack.c.l.b16 %v313
        %v378 = vunpack.c.l.b16 %v314
        %v379 = vunpack.c.l.b16 %v315
        %v380 = vunpack.c.l.b16 %v316
        %v381 = vunpack.c.l.b16 %v317
        %v382 = vunpack.c.l.b16 %v318
        %v383 = vunpack.c.l.b16 %v319
        %v384 = vunpack.c.l.b16 %v320
        %v385 = vunpack.c.l.b16 %v321
        %v386 = vunpack.c.l.b16 %v322
        %v387 = vunpack.c.l.b16 %v323
        %v388 = vunpack.c.l.b16 %v324
        %v389 = vunpack.c.l.b16 %v325
        %v390 = vunpack.c.l.b16 %v326
        %v391 = vunpack.c.l.b16 %v327
        %v392 = vunpack.c.l.b16 %v328
        %v393 = vunpack.c.l.b16 %v329
        %v394 = vunpack.c.l.b16 %v330
        %v395 = vunpack.c.l.b16 %v331
        %v396 = vunpack.c.l.b16 %v332
        %v397 = vunpack.c.l.b16 %v333
        %v398 = vpack.c.b16 %v367, %v366
        %v399 = vpack.c.b16 %v369, %v368
        %v400 = vpack.c.b16 %v371, %v370
        %v401 = vpack.c.b16 %v373, %v372
        %v402 = vpack.c.b16 %v375, %v374
        %v403 = vpack.c.b16 %v377, %v376
        %v404 = vpack.c.b16 %v379, %v378
        %v405 = vpack.c.b16 %v381, %v380
        %v406 = vpack.c.b16 %v383, %v382
        %v407 = vpack.c.b16 %v385, %v384
        %v408 = vpack.c.b16 %v387, %v386
        %v409 = vpack.c.b16 %v389, %v388
        %v410 = vpack.c.b16 %v391, %v390
        %v411 = vpack.c.b16 %v393, %v392
        %v412 = vpack.c.b16 %v395, %v394
        %v413 = vpack.c.b16 %v397, %v396
        %vm414 = vcmask 64512
        %v416 = vsel %vm414, %v398, 0
        %v419 = vsel %vm414, %v399, 0
        %v422 = vsel %vm414, %v400, 0
        %v425 = vsel %vm414, %v401, 0
        %v428 = vsel %vm414, %v402, 0
        %v431 = vsel %vm414, %v403, 0
        %v434 = vsel %vm414, %v404, 0
        %v437 = vsel %vm414, %v405, 0
        %v440 = vsel %vm414, %v406, 0
        %v443 = vsel %vm414, %v407, 0
        %v446 = vsel %vm414, %v408, 0
        %v449 = vsel %vm414, %v409, 0
        %v452 = vsel %vm414, %v410, 0
        %v455 = vsel %vm414, %v411, 0
        %v458 = vsel %vm414, %v412, 0
        %v461 = vsel %vm414, %v413, 0
        %v464 = vsel %vm414, %v286, 0
        %v467 = vsel %vm414, %v287, 0
        %v470 = vsel %vm414, %v288, 0
        %v473 = vsel %vm414, %v289, 0
        %v476 = vsel %vm414, %v290, 0
        %v479 = vsel %vm414, %v291, 0
        %v482 = vsel %vm414, %v292, 0
        %v485 = vsel %vm414, %v293, 0
        %v488 = vsel %vm414, %v294, 0
        %v491 = vsel %vm414, %v295, 0
        %v494 = vsel %vm414, %v296, 0
        %v497 = vsel %vm414, %v297, 0
        %v500 = vsel %vm414, %v298, 0
        %v503 = vsel %vm414, %v299, 0
        %v506 = vsel %vm414, %v300, 0
        %v509 = vsel %vm414, %v301, 0
        %511 = vmatpush.bf16.xpose.msra.mxu0 %v485
        %512 = vmatpush.bf16.xpose.msra.mxu0 %v482
        %513 = vmatpush.bf16.xpose.msra.mxu0 %v479
        %514 = vmatpush.bf16.xpose.msra.mxu0 %v476
        %515 = vmatpush.bf16.xpose.msra.mxu0 %v473
        %516 = vmatpush.bf16.xpose.msra.mxu0 %v470
        %517 = vmatpush.bf16.xpose.msra.mxu0 %v467
        %518 = vmatpush.bf16.xpose.msra.mxu0 %v464
        %519 = vmatmul.bf16.gmra.mxu0 %v416
        %v520 = vpop.f32.mrf.mxu0
        %v521 = vadd.f32 0.0, %v520
        %v522 = vpop.f32.mrf.mxu0
        %v523 = vadd.f32 0.0, %v522
        %524 = vmatmul.bf16.gmra.mxu0 %v419
        %v525 = vpop.f32.mrf.mxu0
        %v526 = vadd.f32 0.0, %v525
        %v527 = vpop.f32.mrf.mxu0
        %v528 = vadd.f32 0.0, %v527
        %529 = vmatmul.bf16.gmra.mxu0 %v422
        %v530 = vpop.f32.mrf.mxu0
        %v531 = vadd.f32 0.0, %v530
        %v532 = vpop.f32.mrf.mxu0
        %v533 = vadd.f32 0.0, %v532
        %534 = vmatmul.bf16.gmra.mxu0 %v425
        %v535 = vpop.f32.mrf.mxu0
        %v536 = vadd.f32 0.0, %v535
        %v537 = vpop.f32.mrf.mxu0
        %v538 = vadd.f32 0.0, %v537
        %539 = vmatmul.bf16.gmra.mxu0 %v428
        %v540 = vpop.f32.mrf.mxu0
        %v541 = vadd.f32 0.0, %v540
        %v542 = vpop.f32.mrf.mxu0
        %v543 = vadd.f32 0.0, %v542
        %544 = vmatmul.bf16.gmra.mxu0 %v431
        %v545 = vpop.f32.mrf.mxu0
        %v546 = vadd.f32 0.0, %v545
        %v547 = vpop.f32.mrf.mxu0
        %v548 = vadd.f32 0.0, %v547
        %549 = vmatmul.bf16.gmra.mxu0 %v434
        %v550 = vpop.f32.mrf.mxu0
        %v551 = vadd.f32 0.0, %v550
        %v552 = vpop.f32.mrf.mxu0
        %v553 = vadd.f32 0.0, %v552
        %554 = vmatmul.bf16.gmra.mxu0 %v437
        %v555 = vpop.f32.mrf.mxu0
        %v556 = vadd.f32 0.0, %v555
        %v557 = vpop.f32.mrf.mxu0
        %v558 = vadd.f32 0.0, %v557
        %559 = vmatmul.bf16.gmra.mxu0 %v440
        %v560 = vpop.f32.mrf.mxu0
        %v561 = vadd.f32 0.0, %v560
        %v562 = vpop.f32.mrf.mxu0
        %v563 = vadd.f32 0.0, %v562
        %564 = vmatmul.bf16.gmra.mxu0 %v443
        %v565 = vpop.f32.mrf.mxu0
        %v566 = vadd.f32 0.0, %v565
        %v567 = vpop.f32.mrf.mxu0
        %v568 = vadd.f32 0.0, %v567
        %569 = vmatmul.bf16.gmra.mxu0 %v446
        %v570 = vpop.f32.mrf.mxu0
        %v571 = vadd.f32 0.0, %v570
        %v572 = vpop.f32.mrf.mxu0
        %v573 = vadd.f32 0.0, %v572
        %574 = vmatmul.bf16.gmra.mxu0 %v449
        %v575 = vpop.f32.mrf.mxu0
        %v576 = vadd.f32 0.0, %v575
        %v577 = vpop.f32.mrf.mxu0
        %v578 = vadd.f32 0.0, %v577
        %579 = vmatmul.bf16.gmra.mxu0 %v452
        %v580 = vpop.f32.mrf.mxu0
        %v581 = vadd.f32 0.0, %v580
        %v582 = vpop.f32.mrf.mxu0
        %v583 = vadd.f32 0.0, %v582
        %584 = vmatmul.bf16.gmra.mxu0 %v455
        %v585 = vpop.f32.mrf.mxu0
        %v586 = vadd.f32 0.0, %v585
        %v587 = vpop.f32.mrf.mxu0
        %v588 = vadd.f32 0.0, %v587
        %589 = vmatmul.bf16.gmra.mxu0 %v458
        %v590 = vpop.f32.mrf.mxu0
        %v591 = vadd.f32 0.0, %v590
        %v592 = vpop.f32.mrf.mxu0
        %v593 = vadd.f32 0.0, %v592
        %594 = vmatmul.bf16.gmra.mxu0 %v461
        %v595 = vpop.f32.mrf.mxu0
        %v596 = vadd.f32 0.0, %v595
        %v597 = vpop.f32.mrf.mxu0
        %v598 = vadd.f32 0.0, %v597
        %599 = vdwg.mxu0
        %600 = vmatpush.bf16.xpose.msra.mxu0 %v509
        %601 = vmatpush.bf16.xpose.msra.mxu0 %v506
        %602 = vmatpush.bf16.xpose.msra.mxu0 %v503
        %603 = vmatpush.bf16.xpose.msra.mxu0 %v500
        %604 = vmatpush.bf16.xpose.msra.mxu0 %v497
        %605 = vmatpush.bf16.xpose.msra.mxu0 %v494
        %606 = vmatpush.bf16.xpose.msra.mxu0 %v491
        %607 = vmatpush.bf16.xpose.msra.mxu0 %v488
        %608 = vmatmul.bf16.gmra.mxu0 %v416
        %v609 = vpop.f32.mrf.mxu0
        %v610 = vadd.f32 0.0, %v609
        %v611 = vpop.f32.mrf.mxu0
        %v612 = vadd.f32 0.0, %v611
        %613 = vmatmul.bf16.gmra.mxu0 %v419
        %v614 = vpop.f32.mrf.mxu0
        %v615 = vadd.f32 0.0, %v614
        %v616 = vpop.f32.mrf.mxu0
        %v617 = vadd.f32 0.0, %v616
        %618 = vmatmul.bf16.gmra.mxu0 %v422
        %v619 = vpop.f32.mrf.mxu0
        %v620 = vadd.f32 0.0, %v619
        %v621 = vpop.f32.mrf.mxu0
        %v622 = vadd.f32 0.0, %v621
        %623 = vmatmul.bf16.gmra.mxu0 %v425
        %v624 = vpop.f32.mrf.mxu0
        %v625 = vadd.f32 0.0, %v624
        %v626 = vpop.f32.mrf.mxu0
        %v627 = vadd.f32 0.0, %v626
        %628 = vmatmul.bf16.gmra.mxu0 %v428
        %v629 = vpop.f32.mrf.mxu0
        %v630 = vadd.f32 0.0, %v629
        %v631 = vpop.f32.mrf.mxu0
        %v632 = vadd.f32 0.0, %v631
        %633 = vmatmul.bf16.gmra.mxu0 %v431
        %v634 = vpop.f32.mrf.mxu0
        %v635 = vadd.f32 0.0, %v634
        %v636 = vpop.f32.mrf.mxu0
        %v637 = vadd.f32 0.0, %v636
        %638 = vmatmul.bf16.gmra.mxu0 %v434
        %v639 = vpop.f32.mrf.mxu0
        %v640 = vadd.f32 0.0, %v639
        %v641 = vpop.f32.mrf.mxu0
        %v642 = vadd.f32 0.0, %v641
        %643 = vmatmul.bf16.gmra.mxu0 %v437
        %v644 = vpop.f32.mrf.mxu0
        %v645 = vadd.f32 0.0, %v644
        %v646 = vpop.f32.mrf.mxu0
        %v647 = vadd.f32 0.0, %v646
        %648 = vmatmul.bf16.gmra.mxu0 %v440
        %v649 = vpop.f32.mrf.mxu0
        %v650 = vadd.f32 0.0, %v649
        %v651 = vpop.f32.mrf.mxu0
        %v652 = vadd.f32 0.0, %v651
        %653 = vmatmul.bf16.gmra.mxu0 %v443
        %v654 = vpop.f32.mrf.mxu0
        %v655 = vadd.f32 0.0, %v654
        %v656 = vpop.f32.mrf.mxu0
        %v657 = vadd.f32 0.0, %v656
        %658 = vmatmul.bf16.gmra.mxu0 %v446
        %v659 = vpop.f32.mrf.mxu0
        %v660 = vadd.f32 0.0, %v659
        %v661 = vpop.f32.mrf.mxu0
        %v662 = vadd.f32 0.0, %v661
        %663 = vmatmul.bf16.gmra.mxu0 %v449
        %v664 = vpop.f32.mrf.mxu0
        %v665 = vadd.f32 0.0, %v664
        %v666 = vpop.f32.mrf.mxu0
        %v667 = vadd.f32 0.0, %v666
        %668 = vmatmul.bf16.gmra.mxu0 %v452
        %v669 = vpop.f32.mrf.mxu0
        %v670 = vadd.f32 0.0, %v669
        %v671 = vpop.f32.mrf.mxu0
        %v672 = vadd.f32 0.0, %v671
        %673 = vmatmul.bf16.gmra.mxu0 %v455
        %v674 = vpop.f32.mrf.mxu0
        %v675 = vadd.f32 0.0, %v674
        %v676 = vpop.f32.mrf.mxu0
        %v677 = vadd.f32 0.0, %v676
        %678 = vmatmul.bf16.gmra.mxu0 %v458
        %v679 = vpop.f32.mrf.mxu0
        %v680 = vadd.f32 0.0, %v679
        %v681 = vpop.f32.mrf.mxu0
        %v682 = vadd.f32 0.0, %v681
        %683 = vmatmul.bf16.gmra.mxu0 %v461
        %v684 = vpop.f32.mrf.mxu0
        %v685 = vadd.f32 0.0, %v684
        %v686 = vpop.f32.mrf.mxu0
        %v687 = vadd.f32 0.0, %v686
        %688 = vdwg.mxu0
        %v689 = vmax.f32 %v521, 0.0
        %v690 = vmax.f32 %v610, 0.0
        %v691 = vmax.f32 %v523, 0.0
        %v692 = vmax.f32 %v612, 0.0
        %v693 = vmax.f32 %v526, 0.0
        %v694 = vmax.f32 %v615, 0.0
        %v695 = vmax.f32 %v528, 0.0
        %v696 = vmax.f32 %v617, 0.0
        %v697 = vmax.f32 %v531, 0.0
        %v698 = vmax.f32 %v620, 0.0
        %v699 = vmax.f32 %v533, 0.0
        %v700 = vmax.f32 %v622, 0.0
        %v701 = vmax.f32 %v536, 0.0
        %v702 = vmax.f32 %v625, 0.0
        %v703 = vmax.f32 %v538, 0.0
        %v704 = vmax.f32 %v627, 0.0
        %v705 = vmax.f32 %v541, 0.0
        %v706 = vmax.f32 %v630, 0.0
        %v707 = vmax.f32 %v543, 0.0
        %v708 = vmax.f32 %v632, 0.0
        %v709 = vmax.f32 %v546, 0.0
        %v710 = vmax.f32 %v635, 0.0
        %v711 = vmax.f32 %v548, 0.0
        %v712 = vmax.f32 %v637, 0.0
        %v713 = vmax.f32 %v551, 0.0
        %v714 = vmax.f32 %v640, 0.0
        %v715 = vmax.f32 %v553, 0.0
        %v716 = vmax.f32 %v642, 0.0
        %v717 = vmax.f32 %v556, 0.0
        %v718 = vmax.f32 %v645, 0.0
        %v719 = vmax.f32 %v558, 0.0
        %v720 = vmax.f32 %v647, 0.0
        %v721 = vmax.f32 %v561, 0.0
        %v722 = vmax.f32 %v650, 0.0
        %v723 = vmax.f32 %v563, 0.0
        %v724 = vmax.f32 %v652, 0.0
        %v725 = vmax.f32 %v566, 0.0
        %v726 = vmax.f32 %v655, 0.0
        %v727 = vmax.f32 %v568, 0.0
        %v728 = vmax.f32 %v657, 0.0
        %v729 = vmax.f32 %v571, 0.0
        %v730 = vmax.f32 %v660, 0.0
        %v731 = vmax.f32 %v573, 0.0
        %v732 = vmax.f32 %v662, 0.0
        %v733 = vmax.f32 %v576, 0.0
        %v734 = vmax.f32 %v665, 0.0
        %v735 = vmax.f32 %v578, 0.0
        %v736 = vmax.f32 %v667, 0.0
        %v737 = vmax.f32 %v581, 0.0
        %v738 = vmax.f32 %v670, 0.0
        %v739 = vmax.f32 %v583, 0.0
        %v740 = vmax.f32 %v672, 0.0
        %v741 = vmax.f32 %v586, 0.0
        %v742 = vmax.f32 %v675, 0.0
        %v743 = vmax.f32 %v588, 0.0
        %v744 = vmax.f32 %v677, 0.0
        %v745 = vmax.f32 %v591, 0.0
        %v746 = vmax.f32 %v680, 0.0
        %v747 = vmax.f32 %v593, 0.0
        %v748 = vmax.f32 %v682, 0.0
        %v749 = vmax.f32 %v596, 0.0
        %v750 = vmax.f32 %v685, 0.0
        %v751 = vmax.f32 %v598, 0.0
        %v752 = vmax.f32 %v687, 0.0
        %v753 = vld [vmem:[%s2] sm:$0xff]
        %v754 = vld [vmem:[%s2 + $0x8] sm:$0xff]
        %v755 = vld [vmem:[%s2 + $0x10] sm:$0xff]
        %v756 = vld [vmem:[%s2 + $0x18] sm:$0xff]
        %v757 = vld [vmem:[%s2 + $0x20] sm:$0xff]
        %v758 = vld [vmem:[%s2 + $0x28] sm:$0xff]
        %v759 = vld [vmem:[%s2 + $0x30] sm:$0xff]
        %v760 = vld [vmem:[%s2 + $0x38] sm:$0xff]
        %v761 = vld [vmem:[%s2 + $0x40] sm:$0xff]
        %v762 = vld [vmem:[%s2 + $0x48] sm:$0xff]
        %v763 = vld [vmem:[%s2 + $0x50] sm:$0xff]
        %v764 = vld [vmem:[%s2 + $0x58] sm:$0xff]
        %v765 = vld [vmem:[%s2 + $0x60] sm:$0xff]
        %v766 = vld [vmem:[%s2 + $0x68] sm:$0xff]
        %v767 = vld [vmem:[%s2 + $0x70] sm:$0xff]
        %v768 = vld [vmem:[%s2 + $0x78] sm:$0xff]
        %v769 = vld [vmem:[%s2 + $0x80] sm:$0xff]
        %v770 = vld [vmem:[%s2 + $0x88] sm:$0xff]
        %v771 = vld [vmem:[%s2 + $0x90] sm:$0xff]
        %v772 = vld [vmem:[%s2 + $0x98] sm:$0xff]
        %v773 = vld [vmem:[%s2 + $0xa0] sm:$0xff]
        %v774 = vld [vmem:[%s2 + $0xa8] sm:$0xff]
        %v775 = vld [vmem:[%s2 + $0xb0] sm:$0xff]
        %v776 = vld [vmem:[%s2 + $0xb8] sm:$0xff]
        %v777 = vld [vmem:[%s2 + $0xc0] sm:$0xff]
        %v778 = vld [vmem:[%s2 + $0xc8] sm:$0xff]
        %v779 = vld [vmem:[%s2 + $0xd0] sm:$0xff]
        %v780 = vld [vmem:[%s2 + $0xd8] sm:$0xff]
        %v781 = vld [vmem:[%s2 + $0xe0] sm:$0xff]
        %v782 = vld [vmem:[%s2 + $0xe8] sm:$0xff]
        %v783 = vld [vmem:[%s2 + $0xf0] sm:$0xff]
        %v784 = vld [vmem:[%s2 + $0xf8] sm:$0xff]
        %v785 = vpack.c.bf16 %v691, %v689
        %v786 = vpack.c.bf16 %v692, %v690
        %v787 = vpack.c.bf16 %v695, %v693
        %v788 = vpack.c.bf16 %v696, %v694
        %v789 = vpack.c.bf16 %v699, %v697
        %v790 = vpack.c.bf16 %v700, %v698
        %v791 = vpack.c.bf16 %v703, %v701
        %v792 = vpack.c.bf16 %v704, %v702
        %v793 = vpack.c.bf16 %v707, %v705
        %v794 = vpack.c.bf16 %v708, %v706
        %v795 = vpack.c.bf16 %v711, %v709
        %v796 = vpack.c.bf16 %v712, %v710
        %v797 = vpack.c.bf16 %v715, %v713
        %v798 = vpack.c.bf16 %v716, %v714
        %v799 = vpack.c.bf16 %v719, %v717
        %v800 = vpack.c.bf16 %v720, %v718
        %v801 = vpack.c.bf16 %v723, %v721
        %v802 = vpack.c.bf16 %v724, %v722
        %v803 = vpack.c.bf16 %v727, %v725
        %v804 = vpack.c.bf16 %v728, %v726
        %v805 = vpack.c.bf16 %v731, %v729
        %v806 = vpack.c.bf16 %v732, %v730
        %v807 = vpack.c.bf16 %v735, %v733
        %v808 = vpack.c.bf16 %v736, %v734
        %v809 = vpack.c.bf16 %v739, %v737
        %v810 = vpack.c.bf16 %v740, %v738
        %v811 = vpack.c.bf16 %v743, %v741
        %v812 = vpack.c.bf16 %v744, %v742
        %v813 = vpack.c.bf16 %v747, %v745
        %v814 = vpack.c.bf16 %v748, %v746
        %v815 = vpack.c.bf16 %v751, %v749
        %v816 = vpack.c.bf16 %v752, %v750
        %v817 = vld [vmem:[%s3] sm:$0xff]
        %v818 = vld [vmem:[%s3 + $0x8] sm:$0xff]
        %v819 = vld [vmem:[%s3 + $0x10] sm:$0xff]
        %v820 = vld [vmem:[%s3 + $0x18] sm:$0xff]
        %v821 = vld [vmem:[%s3 + $0x20] sm:$0xff]
        %v822 = vld [vmem:[%s3 + $0x28] sm:$0xff]
        %v823 = vld [vmem:[%s3 + $0x30] sm:$0xff]
        %v824 = vld [vmem:[%s3 + $0x38] sm:$0xff]
        %v825 = vld [vmem:[%s3 + $0x40] sm:$0xff]
        %v826 = vld [vmem:[%s3 + $0x48] sm:$0xff]
        %v827 = vld [vmem:[%s3 + $0x50] sm:$0xff]
        %v828 = vld [vmem:[%s3 + $0x58] sm:$0xff]
        %v829 = vld [vmem:[%s3 + $0x60] sm:$0xff]
        %v830 = vld [vmem:[%s3 + $0x68] sm:$0xff]
        %v831 = vld [vmem:[%s3 + $0x70] sm:$0xff]
        %v832 = vld [vmem:[%s3 + $0x78] sm:$0xff]
        %v833 = vld [vmem:[%s3 + $0x80] sm:$0xff]
        %v834 = vld [vmem:[%s3 + $0x88] sm:$0xff]
        %v835 = vld [vmem:[%s3 + $0x90] sm:$0xff]
        %v836 = vld [vmem:[%s3 + $0x98] sm:$0xff]
        %v837 = vld [vmem:[%s3 + $0xa0] sm:$0xff]
        %v838 = vld [vmem:[%s3 + $0xa8] sm:$0xff]
        %v839 = vld [vmem:[%s3 + $0xb0] sm:$0xff]
        %v840 = vld [vmem:[%s3 + $0xb8] sm:$0xff]
        %v841 = vld [vmem:[%s3 + $0xc0] sm:$0xff]
        %v842 = vld [vmem:[%s3 + $0xc8] sm:$0xff]
        %v843 = vld [vmem:[%s3 + $0xd0] sm:$0xff]
        %v844 = vld [vmem:[%s3 + $0xd8] sm:$0xff]
        %v845 = vld [vmem:[%s3 + $0xe0] sm:$0xff]
        %v846 = vld [vmem:[%s3 + $0xe8] sm:$0xff]
        %v847 = vld [vmem:[%s3 + $0xf0] sm:$0xff]
        %v848 = vld [vmem:[%s3 + $0xf8] sm:$0xff]
        %850 = vset.pattern.permute.xlu0 0
        %851 = vperm.xlu0 %850, %v817
        %v852 = vpop.permute.xlu0 %851
        %855 = vset.pattern.permute.xlu0 0
        %856 = vperm.xlu0 %855, %v818
        %v857 = vpop.permute.xlu0 %856
        %860 = vset.pattern.permute.xlu0 0
        %861 = vperm.xlu0 %860, %v819
        %v862 = vpop.permute.xlu0 %861
        %865 = vset.pattern.permute.xlu0 0
        %866 = vperm.xlu0 %865, %v820
        %v867 = vpop.permute.xlu0 %866
        %870 = vset.pattern.permute.xlu0 0
        %871 = vperm.xlu0 %870, %v821
        %v872 = vpop.permute.xlu0 %871
        %875 = vset.pattern.permute.xlu0 0
        %876 = vperm.xlu0 %875, %v822
        %v877 = vpop.permute.xlu0 %876
        %880 = vset.pattern.permute.xlu0 0
        %881 = vperm.xlu0 %880, %v823
        %v882 = vpop.permute.xlu0 %881
        %885 = vset.pattern.permute.xlu0 0
        %886 = vperm.xlu0 %885, %v824
        %v887 = vpop.permute.xlu0 %886
        %890 = vset.pattern.permute.xlu0 0
        %891 = vperm.xlu0 %890, %v825
        %v892 = vpop.permute.xlu0 %891
        %895 = vset.pattern.permute.xlu0 0
        %896 = vperm.xlu0 %895, %v826
        %v897 = vpop.permute.xlu0 %896
        %900 = vset.pattern.permute.xlu0 0
        %901 = vperm.xlu0 %900, %v827
        %v902 = vpop.permute.xlu0 %901
        %905 = vset.pattern.permute.xlu0 0
        %906 = vperm.xlu0 %905, %v828
        %v907 = vpop.permute.xlu0 %906
        %910 = vset.pattern.permute.xlu0 0
        %911 = vperm.xlu0 %910, %v829
        %v912 = vpop.permute.xlu0 %911
        %915 = vset.pattern.permute.xlu0 0
        %916 = vperm.xlu0 %915, %v830
        %v917 = vpop.permute.xlu0 %916
        %920 = vset.pattern.permute.xlu0 0
        %921 = vperm.xlu0 %920, %v831
        %v922 = vpop.permute.xlu0 %921
        %925 = vset.pattern.permute.xlu0 0
        %926 = vperm.xlu0 %925, %v832
        %v927 = vpop.permute.xlu0 %926
        %930 = vset.pattern.permute.xlu0 0
        %931 = vperm.xlu0 %930, %v833
        %v932 = vpop.permute.xlu0 %931
        %935 = vset.pattern.permute.xlu0 0
        %936 = vperm.xlu0 %935, %v834
        %v937 = vpop.permute.xlu0 %936
        %940 = vset.pattern.permute.xlu0 0
        %941 = vperm.xlu0 %940, %v835
        %v942 = vpop.permute.xlu0 %941
        %945 = vset.pattern.permute.xlu0 0
        %946 = vperm.xlu0 %945, %v836
        %v947 = vpop.permute.xlu0 %946
        %950 = vset.pattern.permute.xlu0 0
        %951 = vperm.xlu0 %950, %v837
        %v952 = vpop.permute.xlu0 %951
        %955 = vset.pattern.permute.xlu0 0
        %956 = vperm.xlu0 %955, %v838
        %v957 = vpop.permute.xlu0 %956
        %960 = vset.pattern.permute.xlu0 0
        %961 = vperm.xlu0 %960, %v839
        %v962 = vpop.permute.xlu0 %961
        %965 = vset.pattern.permute.xlu0 0
        %966 = vperm.xlu0 %965, %v840
        %v967 = vpop.permute.xlu0 %966
        %970 = vset.pattern.permute.xlu0 0
        %971 = vperm.xlu0 %970, %v841
        %v972 = vpop.permute.xlu0 %971
        %975 = vset.pattern.permute.xlu0 0
        %976 = vperm.xlu0 %975, %v842
        %v977 = vpop.permute.xlu0 %976
        %980 = vset.pattern.permute.xlu0 0
        %981 = vperm.xlu0 %980, %v843
        %v982 = vpop.permute.xlu0 %981
        %985 = vset.pattern.permute.xlu0 0
        %986 = vperm.xlu0 %985, %v844
        %v987 = vpop.permute.xlu0 %986
        %990 = vset.pattern.permute.xlu0 0
        %991 = vperm.xlu0 %990, %v845
        %v992 = vpop.permute.xlu0 %991
        %995 = vset.pattern.permute.xlu0 0
        %996 = vperm.xlu0 %995, %v846
        %v997 = vpop.permute.xlu0 %996
        %1000 = vset.pattern.permute.xlu0 0
        %1001 = vperm.xlu0 %1000, %v847
        %v1002 = vpop.permute.xlu0 %1001
        %1005 = vset.pattern.permute.xlu0 0
        %1006 = vperm.xlu0 %1005, %v848
        %v1007 = vpop.permute.xlu0 %1006
        %v1041 = vunpack.c.l.b16 %v753
        %v1042 = vunpack.c.h.b16 %v753
        %v1043 = vunpack.c.l.b16 %v754
        %v1044 = vunpack.c.h.b16 %v754
        %v1045 = vunpack.c.l.b16 %v755
        %v1046 = vunpack.c.h.b16 %v755
        %v1047 = vunpack.c.l.b16 %v756
        %v1048 = vunpack.c.h.b16 %v756
        %v1049 = vunpack.c.l.b16 %v757
        %v1050 = vunpack.c.h.b16 %v757
        %v1051 = vunpack.c.l.b16 %v758
        %v1052 = vunpack.c.h.b16 %v758
        %v1053 = vunpack.c.l.b16 %v759
        %v1054 = vunpack.c.h.b16 %v759
        %v1055 = vunpack.c.l.b16 %v760
        %v1056 = vunpack.c.h.b16 %v760
        %v1057 = vunpack.c.l.b16 %v761
        %v1058 = vunpack.c.h.b16 %v761
        %v1059 = vunpack.c.l.b16 %v762
        %v1060 = vunpack.c.h.b16 %v762
        %v1061 = vunpack.c.l.b16 %v763
        %v1062 = vunpack.c.h.b16 %v763
        %v1063 = vunpack.c.l.b16 %v764
        %v1064 = vunpack.c.h.b16 %v764
        %v1065 = vunpack.c.l.b16 %v765
        %v1066 = vunpack.c.h.b16 %v765
        %v1067 = vunpack.c.l.b16 %v766
        %v1068 = vunpack.c.h.b16 %v766
        %v1069 = vunpack.c.l.b16 %v767
        %v1070 = vunpack.c.h.b16 %v767
        %v1071 = vunpack.c.l.b16 %v768
        %v1072 = vunpack.c.h.b16 %v768
        %v1073 = vunpack.c.l.b16 %v769
        %v1074 = vunpack.c.h.b16 %v769
        %v1075 = vunpack.c.l.b16 %v770
        %v1076 = vunpack.c.h.b16 %v770
        %v1077 = vunpack.c.l.b16 %v771
        %v1078 = vunpack.c.h.b16 %v771
        %v1079 = vunpack.c.l.b16 %v772
        %v1080 = vunpack.c.h.b16 %v772
        %v1081 = vunpack.c.l.b16 %v773
        %v1082 = vunpack.c.h.b16 %v773
        %v1083 = vunpack.c.l.b16 %v774
        %v1084 = vunpack.c.h.b16 %v774
        %v1085 = vunpack.c.l.b16 %v775
        %v1086 = vunpack.c.h.b16 %v775
        %v1087 = vunpack.c.l.b16 %v776
        %v1088 = vunpack.c.h.b16 %v776
        %v1089 = vunpack.c.l.b16 %v777
        %v1090 = vunpack.c.h.b16 %v777
        %v1091 = vunpack.c.l.b16 %v778
        %v1092 = vunpack.c.h.b16 %v778
        %v1093 = vunpack.c.l.b16 %v779
        %v1094 = vunpack.c.h.b16 %v779
        %v1095 = vunpack.c.l.b16 %v780
        %v1096 = vunpack.c.h.b16 %v780
        %v1097 = vunpack.c.l.b16 %v781
        %v1098 = vunpack.c.h.b16 %v781
        %v1099 = vunpack.c.l.b16 %v782
        %v1100 = vunpack.c.h.b16 %v782
        %v1101 = vunpack.c.l.b16 %v783
        %v1102 = vunpack.c.h.b16 %v783
        %v1103 = vunpack.c.l.b16 %v784
        %v1104 = vunpack.c.h.b16 %v784
        %v1105 = vpack.c.b16 %v1043, %v1041
        %v1106 = vpack.c.b16 %v1044, %v1042
        %v1107 = vpack.c.b16 %v1047, %v1045
        %v1108 = vpack.c.b16 %v1048, %v1046
        %v1109 = vpack.c.b16 %v1051, %v1049
        %v1110 = vpack.c.b16 %v1052, %v1050
        %v1111 = vpack.c.b16 %v1055, %v1053
        %v1112 = vpack.c.b16 %v1056, %v1054
        %v1113 = vpack.c.b16 %v1059, %v1057
        %v1114 = vpack.c.b16 %v1060, %v1058
        %v1115 = vpack.c.b16 %v1063, %v1061
        %v1116 = vpack.c.b16 %v1064, %v1062
        %v1117 = vpack.c.b16 %v1067, %v1065
        %v1118 = vpack.c.b16 %v1068, %v1066
        %v1119 = vpack.c.b16 %v1071, %v1069
        %v1120 = vpack.c.b16 %v1072, %v1070
        %v1121 = vpack.c.b16 %v1075, %v1073
        %v1122 = vpack.c.b16 %v1076, %v1074
        %v1123 = vpack.c.b16 %v1079, %v1077
        %v1124 = vpack.c.b16 %v1080, %v1078
        %v1125 = vpack.c.b16 %v1083, %v1081
        %v1126 = vpack.c.b16 %v1084, %v1082
        %v1127 = vpack.c.b16 %v1087, %v1085
        %v1128 = vpack.c.b16 %v1088, %v1086
        %v1129 = vpack.c.b16 %v1091, %v1089
        %v1130 = vpack.c.b16 %v1092, %v1090
        %v1131 = vpack.c.b16 %v1095, %v1093
        %v1132 = vpack.c.b16 %v1096, %v1094
        %v1133 = vpack.c.b16 %v1099, %v1097
        %v1134 = vpack.c.b16 %v1100, %v1098
        %v1135 = vpack.c.b16 %v1103, %v1101
        %v1136 = vpack.c.b16 %v1104, %v1102
        %1169 = vmatpush.bf16.msra.mxu0 %v799
        %1170 = vmatpush.bf16.msra.mxu0 %v797
        %1171 = vmatpush.bf16.msra.mxu0 %v795
        %1172 = vmatpush.bf16.msra.mxu0 %v793
        %1173 = vmatpush.bf16.msra.mxu0 %v791
        %1174 = vmatpush.bf16.msra.mxu0 %v789
        %1175 = vmatpush.bf16.msra.mxu0 %v787
        %1176 = vmatpush.bf16.msra.mxu0 %v785
        %1177 = vmatmul.bf16.gmra.mxu0 %v1105
        %v1178 = vpop.f32.mrf.mxu0
        %v1179 = vadd.f32 %v852, %v1178
        %v1180 = vpop.f32.mrf.mxu0
        %v1181 = vadd.f32 %v857, %v1180
        %1182 = vmatmul.bf16.gmra.mxu0 %v1107
        %v1183 = vpop.f32.mrf.mxu0
        %v1184 = vadd.f32 %v862, %v1183
        %v1185 = vpop.f32.mrf.mxu0
        %v1186 = vadd.f32 %v867, %v1185
        %1187 = vmatmul.bf16.gmra.mxu0 %v1109
        %v1188 = vpop.f32.mrf.mxu0
        %v1189 = vadd.f32 %v872, %v1188
        %v1190 = vpop.f32.mrf.mxu0
        %v1191 = vadd.f32 %v877, %v1190
        %1192 = vmatmul.bf16.gmra.mxu0 %v1111
        %v1193 = vpop.f32.mrf.mxu0
        %v1194 = vadd.f32 %v882, %v1193
        %v1195 = vpop.f32.mrf.mxu0
        %v1196 = vadd.f32 %v887, %v1195
        %1197 = vmatmul.bf16.gmra.mxu0 %v1113
        %v1198 = vpop.f32.mrf.mxu0
        %v1199 = vadd.f32 %v892, %v1198
        %v1200 = vpop.f32.mrf.mxu0
        %v1201 = vadd.f32 %v897, %v1200
        %1202 = vmatmul.bf16.gmra.mxu0 %v1115
        %v1203 = vpop.f32.mrf.mxu0
        %v1204 = vadd.f32 %v902, %v1203
        %v1205 = vpop.f32.mrf.mxu0
        %v1206 = vadd.f32 %v907, %v1205
        %1207 = vmatmul.bf16.gmra.mxu0 %v1117
        %v1208 = vpop.f32.mrf.mxu0
        %v1209 = vadd.f32 %v912, %v1208
        %v1210 = vpop.f32.mrf.mxu0
        %v1211 = vadd.f32 %v917, %v1210
        %1212 = vmatmul.bf16.gmra.mxu0 %v1119
        %v1213 = vpop.f32.mrf.mxu0
        %v1214 = vadd.f32 %v922, %v1213
        %v1215 = vpop.f32.mrf.mxu0
        %v1216 = vadd.f32 %v927, %v1215
        %1217 = vmatmul.bf16.gmra.mxu0 %v1121
        %v1218 = vpop.f32.mrf.mxu0
        %v1219 = vadd.f32 %v932, %v1218
        %v1220 = vpop.f32.mrf.mxu0
        %v1221 = vadd.f32 %v937, %v1220
        %1222 = vmatmul.bf16.gmra.mxu0 %v1123
        %v1223 = vpop.f32.mrf.mxu0
        %v1224 = vadd.f32 %v942, %v1223
        %v1225 = vpop.f32.mrf.mxu0
        %v1226 = vadd.f32 %v947, %v1225
        %1227 = vmatmul.bf16.gmra.mxu0 %v1125
        %v1228 = vpop.f32.mrf.mxu0
        %v1229 = vadd.f32 %v952, %v1228
        %v1230 = vpop.f32.mrf.mxu0
        %v1231 = vadd.f32 %v957, %v1230
        %1232 = vmatmul.bf16.gmra.mxu0 %v1127
        %v1233 = vpop.f32.mrf.mxu0
        %v1234 = vadd.f32 %v962, %v1233
        %v1235 = vpop.f32.mrf.mxu0
        %v1236 = vadd.f32 %v967, %v1235
        %1237 = vmatmul.bf16.gmra.mxu0 %v1129
        %v1238 = vpop.f32.mrf.mxu0
        %v1239 = vadd.f32 %v972, %v1238
        %v1240 = vpop.f32.mrf.mxu0
        %v1241 = vadd.f32 %v977, %v1240
        %1242 = vmatmul.bf16.gmra.mxu0 %v1131
        %v1243 = vpop.f32.mrf.mxu0
        %v1244 = vadd.f32 %v982, %v1243
        %v1245 = vpop.f32.mrf.mxu0
        %v1246 = vadd.f32 %v987, %v1245
        %1247 = vmatmul.bf16.gmra.mxu0 %v1133
        %v1248 = vpop.f32.mrf.mxu0
        %v1249 = vadd.f32 %v992, %v1248
        %v1250 = vpop.f32.mrf.mxu0
        %v1251 = vadd.f32 %v997, %v1250
        %1252 = vmatmul.bf16.gmra.mxu0 %v1135
        %v1253 = vpop.f32.mrf.mxu0
        %v1254 = vadd.f32 %v1002, %v1253
        %v1255 = vpop.f32.mrf.mxu0
        %v1256 = vadd.f32 %v1007, %v1255
        %1257 = vdwg.mxu0
        %1258 = vmatpush.bf16.msra.mxu0 %v815
        %1259 = vmatpush.bf16.msra.mxu0 %v813
        %1260 = vmatpush.bf16.msra.mxu0 %v811
        %1261 = vmatpush.bf16.msra.mxu0 %v809
        %1262 = vmatpush.bf16.msra.mxu0 %v807
        %1263 = vmatpush.bf16.msra.mxu0 %v805
        %1264 = vmatpush.bf16.msra.mxu0 %v803
        %1265 = vmatpush.bf16.msra.mxu0 %v801
        %1266 = vmatmul.bf16.gmra.mxu0 %v1106
        %v1267 = vpop.f32.mrf.mxu0
        %v1268 = vadd.f32 %v1179, %v1267
        %v1269 = vpop.f32.mrf.mxu0
        %v1270 = vadd.f32 %v1181, %v1269
        %1271 = vmatmul.bf16.gmra.mxu0 %v1108
        %v1272 = vpop.f32.mrf.mxu0
        %v1273 = vadd.f32 %v1184, %v1272
        %v1274 = vpop.f32.mrf.mxu0
        %v1275 = vadd.f32 %v1186, %v1274
        %1276 = vmatmul.bf16.gmra.mxu0 %v1110
        %v1277 = vpop.f32.mrf.mxu0
        %v1278 = vadd.f32 %v1189, %v1277
        %v1279 = vpop.f32.mrf.mxu0
        %v1280 = vadd.f32 %v1191, %v1279
        %1281 = vmatmul.bf16.gmra.mxu0 %v1112
        %v1282 = vpop.f32.mrf.mxu0
        %v1283 = vadd.f32 %v1194, %v1282
        %v1284 = vpop.f32.mrf.mxu0
        %v1285 = vadd.f32 %v1196, %v1284
        %1286 = vmatmul.bf16.gmra.mxu0 %v1114
        %v1287 = vpop.f32.mrf.mxu0
        %v1288 = vadd.f32 %v1199, %v1287
        %v1289 = vpop.f32.mrf.mxu0
        %v1290 = vadd.f32 %v1201, %v1289
        %1291 = vmatmul.bf16.gmra.mxu0 %v1116
        %v1292 = vpop.f32.mrf.mxu0
        %v1293 = vadd.f32 %v1204, %v1292
        %v1294 = vpop.f32.mrf.mxu0
        %v1295 = vadd.f32 %v1206, %v1294
        %1296 = vmatmul.bf16.gmra.mxu0 %v1118
        %v1297 = vpop.f32.mrf.mxu0
        %v1298 = vadd.f32 %v1209, %v1297
        %v1299 = vpop.f32.mrf.mxu0
        %v1300 = vadd.f32 %v1211, %v1299
        %1301 = vmatmul.bf16.gmra.mxu0 %v1120
        %v1302 = vpop.f32.mrf.mxu0
        %v1303 = vadd.f32 %v1214, %v1302
        %v1304 = vpop.f32.mrf.mxu0
        %v1305 = vadd.f32 %v1216, %v1304
        %1306 = vmatmul.bf16.gmra.mxu0 %v1122
        %v1307 = vpop.f32.mrf.mxu0
        %v1308 = vadd.f32 %v1219, %v1307
        %v1309 = vpop.f32.mrf.mxu0
        %v1310 = vadd.f32 %v1221, %v1309
        %1311 = vmatmul.bf16.gmra.mxu0 %v1124
        %v1312 = vpop.f32.mrf.mxu0
        %v1313 = vadd.f32 %v1224, %v1312
        %v1314 = vpop.f32.mrf.mxu0
        %v1315 = vadd.f32 %v1226, %v1314
        %1316 = vmatmul.bf16.gmra.mxu0 %v1126
        %v1317 = vpop.f32.mrf.mxu0
        %v1318 = vadd.f32 %v1229, %v1317
        %v1319 = vpop.f32.mrf.mxu0
        %v1320 = vadd.f32 %v1231, %v1319
        %1321 = vmatmul.bf16.gmra.mxu0 %v1128
        %v1322 = vpop.f32.mrf.mxu0
        %v1323 = vadd.f32 %v1234, %v1322
        %v1324 = vpop.f32.mrf.mxu0
        %v1325 = vadd.f32 %v1236, %v1324
        %1326 = vmatmul.bf16.gmra.mxu0 %v1130
        %v1327 = vpop.f32.mrf.mxu0
        %v1328 = vadd.f32 %v1239, %v1327
        %v1329 = vpop.f32.mrf.mxu0
        %v1330 = vadd.f32 %v1241, %v1329
        %1331 = vmatmul.bf16.gmra.mxu0 %v1132
        %v1332 = vpop.f32.mrf.mxu0
        %v1333 = vadd.f32 %v1244, %v1332
        %v1334 = vpop.f32.mrf.mxu0
        %v1335 = vadd.f32 %v1246, %v1334
        %1336 = vmatmul.bf16.gmra.mxu0 %v1134
        %v1337 = vpop.f32.mrf.mxu0
        %v1338 = vadd.f32 %v1249, %v1337
        %v1339 = vpop.f32.mrf.mxu0
        %v1340 = vadd.f32 %v1251, %v1339
        %1341 = vmatmul.bf16.gmra.mxu0 %v1136
        %v1342 = vpop.f32.mrf.mxu0
        %v1343 = vadd.f32 %v1254, %v1342
        %v1344 = vpop.f32.mrf.mxu0
        %v1345 = vadd.f32 %v1256, %v1344
        %1346 = vdwg.mxu0
        %1347 = vmatpush.bf16.msra.mxu0 %v800
        %1348 = vmatpush.bf16.msra.mxu0 %v798
        %1349 = vmatpush.bf16.msra.mxu0 %v796
        %1350 = vmatpush.bf16.msra.mxu0 %v794
        %1351 = vmatpush.bf16.msra.mxu0 %v792
        %1352 = vmatpush.bf16.msra.mxu0 %v790
        %1353 = vmatpush.bf16.msra.mxu0 %v788
        %1354 = vmatpush.bf16.msra.mxu0 %v786
        %1355 = vmatmul.bf16.gmra.mxu0 %v1105
        %v1356 = vpop.f32.mrf.mxu0
        %v1357 = vadd.f32 %v852, %v1356
        %v1358 = vpop.f32.mrf.mxu0
        %v1359 = vadd.f32 %v857, %v1358
        %1360 = vmatmul.bf16.gmra.mxu0 %v1107
        %v1361 = vpop.f32.mrf.mxu0
        %v1362 = vadd.f32 %v862, %v1361
        %v1363 = vpop.f32.mrf.mxu0
        %v1364 = vadd.f32 %v867, %v1363
        %1365 = vmatmul.bf16.gmra.mxu0 %v1109
        %v1366 = vpop.f32.mrf.mxu0
        %v1367 = vadd.f32 %v872, %v1366
        %v1368 = vpop.f32.mrf.mxu0
        %v1369 = vadd.f32 %v877, %v1368
        %1370 = vmatmul.bf16.gmra.mxu0 %v1111
        %v1371 = vpop.f32.mrf.mxu0
        %v1372 = vadd.f32 %v882, %v1371
        %v1373 = vpop.f32.mrf.mxu0
        %v1374 = vadd.f32 %v887, %v1373
        %1375 = vmatmul.bf16.gmra.mxu0 %v1113
        %v1376 = vpop.f32.mrf.mxu0
        %v1377 = vadd.f32 %v892, %v1376
        %v1378 = vpop.f32.mrf.mxu0
        %v1379 = vadd.f32 %v897, %v1378
        %1380 = vmatmul.bf16.gmra.mxu0 %v1115
        %v1381 = vpop.f32.mrf.mxu0
        %v1382 = vadd.f32 %v902, %v1381
        %v1383 = vpop.f32.mrf.mxu0
        %v1384 = vadd.f32 %v907, %v1383
        %1385 = vmatmul.bf16.gmra.mxu0 %v1117
        %v1386 = vpop.f32.mrf.mxu0
        %v1387 = vadd.f32 %v912, %v1386
        %v1388 = vpop.f32.mrf.mxu0
        %v1389 = vadd.f32 %v917, %v1388
        %1390 = vmatmul.bf16.gmra.mxu0 %v1119
        %v1391 = vpop.f32.mrf.mxu0
        %v1392 = vadd.f32 %v922, %v1391
        %v1393 = vpop.f32.mrf.mxu0
        %v1394 = vadd.f32 %v927, %v1393
        %1395 = vmatmul.bf16.gmra.mxu0 %v1121
        %v1396 = vpop.f32.mrf.mxu0
        %v1397 = vadd.f32 %v932, %v1396
        %v1398 = vpop.f32.mrf.mxu0
        %v1399 = vadd.f32 %v937, %v1398
        %1400 = vmatmul.bf16.gmra.mxu0 %v1123
        %v1401 = vpop.f32.mrf.mxu0
        %v1402 = vadd.f32 %v942, %v1401
        %v1403 = vpop.f32.mrf.mxu0
        %v1404 = vadd.f32 %v947, %v1403
        %1405 = vmatmul.bf16.gmra.mxu0 %v1125
        %v1406 = vpop.f32.mrf.mxu0
        %v1407 = vadd.f32 %v952, %v1406
        %v1408 = vpop.f32.mrf.mxu0
        %v1409 = vadd.f32 %v957, %v1408
        %1410 = vmatmul.bf16.gmra.mxu0 %v1127
        %v1411 = vpop.f32.mrf.mxu0
        %v1412 = vadd.f32 %v962, %v1411
        %v1413 = vpop.f32.mrf.mxu0
        %v1414 = vadd.f32 %v967, %v1413
        %1415 = vmatmul.bf16.gmra.mxu0 %v1129
        %v1416 = vpop.f32.mrf.mxu0
        %v1417 = vadd.f32 %v972, %v1416
        %v1418 = vpop.f32.mrf.mxu0
        %v1419 = vadd.f32 %v977, %v1418
        %1420 = vmatmul.bf16.gmra.mxu0 %v1131
        %v1421 = vpop.f32.mrf.mxu0
        %v1422 = vadd.f32 %v982, %v1421
        %v1423 = vpop.f32.mrf.mxu0
        %v1424 = vadd.f32 %v987, %v1423
        %1425 = vmatmul.bf16.gmra.mxu0 %v1133
        %v1426 = vpop.f32.mrf.mxu0
        %v1427 = vadd.f32 %v992, %v1426
        %v1428 = vpop.f32.mrf.mxu0
        %v1429 = vadd.f32 %v997, %v1428
        %1430 = vmatmul.bf16.gmra.mxu0 %v1135
        %v1431 = vpop.f32.mrf.mxu0
        %v1432 = vadd.f32 %v1002, %v1431
        %v1433 = vpop.f32.mrf.mxu0
        %v1434 = vadd.f32 %v1007, %v1433
        %1435 = vdwg.mxu0
        %1436 = vmatpush.bf16.msra.mxu0 %v816
        %1437 = vmatpush.bf16.msra.mxu0 %v814
        %1438 = vmatpush.bf16.msra.mxu0 %v812
        %1439 = vmatpush.bf16.msra.mxu0 %v810
        %1440 = vmatpush.bf16.msra.mxu0 %v808
        %1441 = vmatpush.bf16.msra.mxu0 %v806
        %1442 = vmatpush.bf16.msra.mxu0 %v804
        %1443 = vmatpush.bf16.msra.mxu0 %v802
        %1444 = vmatmul.bf16.gmra.mxu0 %v1106
        %v1445 = vpop.f32.mrf.mxu0
        %v1446 = vadd.f32 %v1357, %v1445
        %v1447 = vpop.f32.mrf.mxu0
        %v1448 = vadd.f32 %v1359, %v1447
        %1449 = vmatmul.bf16.gmra.mxu0 %v1108
        %v1450 = vpop.f32.mrf.mxu0
        %v1451 = vadd.f32 %v1362, %v1450
        %v1452 = vpop.f32.mrf.mxu0
        %v1453 = vadd.f32 %v1364, %v1452
        %1454 = vmatmul.bf16.gmra.mxu0 %v1110
        %v1455 = vpop.f32.mrf.mxu0
        %v1456 = vadd.f32 %v1367, %v1455
        %v1457 = vpop.f32.mrf.mxu0
        %v1458 = vadd.f32 %v1369, %v1457
        %1459 = vmatmul.bf16.gmra.mxu0 %v1112
        %v1460 = vpop.f32.mrf.mxu0
        %v1461 = vadd.f32 %v1372, %v1460
        %v1462 = vpop.f32.mrf.mxu0
        %v1463 = vadd.f32 %v1374, %v1462
        %1464 = vmatmul.bf16.gmra.mxu0 %v1114
        %v1465 = vpop.f32.mrf.mxu0
        %v1466 = vadd.f32 %v1377, %v1465
        %v1467 = vpop.f32.mrf.mxu0
        %v1468 = vadd.f32 %v1379, %v1467
        %1469 = vmatmul.bf16.gmra.mxu0 %v1116
        %v1470 = vpop.f32.mrf.mxu0
        %v1471 = vadd.f32 %v1382, %v1470
        %v1472 = vpop.f32.mrf.mxu0
        %v1473 = vadd.f32 %v1384, %v1472
        %1474 = vmatmul.bf16.gmra.mxu0 %v1118
        %v1475 = vpop.f32.mrf.mxu0
        %v1476 = vadd.f32 %v1387, %v1475
        %v1477 = vpop.f32.mrf.mxu0
        %v1478 = vadd.f32 %v1389, %v1477
        %1479 = vmatmul.bf16.gmra.mxu0 %v1120
        %v1480 = vpop.f32.mrf.mxu0
        %v1481 = vadd.f32 %v1392, %v1480
        %v1482 = vpop.f32.mrf.mxu0
        %v1483 = vadd.f32 %v1394, %v1482
        %1484 = vmatmul.bf16.gmra.mxu0 %v1122
        %v1485 = vpop.f32.mrf.mxu0
        %v1486 = vadd.f32 %v1397, %v1485
        %v1487 = vpop.f32.mrf.mxu0
        %v1488 = vadd.f32 %v1399, %v1487
        %1489 = vmatmul.bf16.gmra.mxu0 %v1124
        %v1490 = vpop.f32.mrf.mxu0
        %v1491 = vadd.f32 %v1402, %v1490
        %v1492 = vpop.f32.mrf.mxu0
        %v1493 = vadd.f32 %v1404, %v1492
        %1494 = vmatmul.bf16.gmra.mxu0 %v1126
        %v1495 = vpop.f32.mrf.mxu0
        %v1496 = vadd.f32 %v1407, %v1495
        %v1497 = vpop.f32.mrf.mxu0
        %v1498 = vadd.f32 %v1409, %v1497
        %1499 = vmatmul.bf16.gmra.mxu0 %v1128
        %v1500 = vpop.f32.mrf.mxu0
        %v1501 = vadd.f32 %v1412, %v1500
        %v1502 = vpop.f32.mrf.mxu0
        %v1503 = vadd.f32 %v1414, %v1502
        %1504 = vmatmul.bf16.gmra.mxu0 %v1130
        %v1505 = vpop.f32.mrf.mxu0
        %v1506 = vadd.f32 %v1417, %v1505
        %v1507 = vpop.f32.mrf.mxu0
        %v1508 = vadd.f32 %v1419, %v1507
        %1509 = vmatmul.bf16.gmra.mxu0 %v1132
        %v1510 = vpop.f32.mrf.mxu0
        %v1511 = vadd.f32 %v1422, %v1510
        %v1512 = vpop.f32.mrf.mxu0
        %v1513 = vadd.f32 %v1424, %v1512
        %1514 = vmatmul.bf16.gmra.mxu0 %v1134
        %v1515 = vpop.f32.mrf.mxu0
        %v1516 = vadd.f32 %v1427, %v1515
        %v1517 = vpop.f32.mrf.mxu0
        %v1518 = vadd.f32 %v1429, %v1517
        %1519 = vmatmul.bf16.gmra.mxu0 %v1136
        %v1520 = vpop.f32.mrf.mxu0
        %v1521 = vadd.f32 %v1432, %v1520
        %v1522 = vpop.f32.mrf.mxu0
        %v1523 = vadd.f32 %v1434, %v1522
        %1524 = vdwg.mxu0
        %v1525 = vmax.f32 %v1268, 0.0
        %v1526 = vmax.f32 %v1446, 0.0
        %v1527 = vmax.f32 %v1270, 0.0
        %v1528 = vmax.f32 %v1448, 0.0
        %v1529 = vmax.f32 %v1273, 0.0
        %v1530 = vmax.f32 %v1451, 0.0
        %v1531 = vmax.f32 %v1275, 0.0
        %v1532 = vmax.f32 %v1453, 0.0
        %v1533 = vmax.f32 %v1278, 0.0
        %v1534 = vmax.f32 %v1456, 0.0
        %v1535 = vmax.f32 %v1280, 0.0
        %v1536 = vmax.f32 %v1458, 0.0
        %v1537 = vmax.f32 %v1283, 0.0
        %v1538 = vmax.f32 %v1461, 0.0
        %v1539 = vmax.f32 %v1285, 0.0
        %v1540 = vmax.f32 %v1463, 0.0
        %v1541 = vmax.f32 %v1288, 0.0
        %v1542 = vmax.f32 %v1466, 0.0
        %v1543 = vmax.f32 %v1290, 0.0
        %v1544 = vmax.f32 %v1468, 0.0
        %v1545 = vmax.f32 %v1293, 0.0
        %v1546 = vmax.f32 %v1471, 0.0
        %v1547 = vmax.f32 %v1295, 0.0
        %v1548 = vmax.f32 %v1473, 0.0
        %v1549 = vmax.f32 %v1298, 0.0
        %v1550 = vmax.f32 %v1476, 0.0
        %v1551 = vmax.f32 %v1300, 0.0
        %v1552 = vmax.f32 %v1478, 0.0
        %v1553 = vmax.f32 %v1303, 0.0
        %v1554 = vmax.f32 %v1481, 0.0
        %v1555 = vmax.f32 %v1305, 0.0
        %v1556 = vmax.f32 %v1483, 0.0
        %v1557 = vmax.f32 %v1308, 0.0
        %v1558 = vmax.f32 %v1486, 0.0
        %v1559 = vmax.f32 %v1310, 0.0
        %v1560 = vmax.f32 %v1488, 0.0
        %v1561 = vmax.f32 %v1313, 0.0
        %v1562 = vmax.f32 %v1491, 0.0
        %v1563 = vmax.f32 %v1315, 0.0
        %v1564 = vmax.f32 %v1493, 0.0
        %v1565 = vmax.f32 %v1318, 0.0
        %v1566 = vmax.f32 %v1496, 0.0
        %v1567 = vmax.f32 %v1320, 0.0
        %v1568 = vmax.f32 %v1498, 0.0
        %v1569 = vmax.f32 %v1323, 0.0
        %v1570 = vmax.f32 %v1501, 0.0
        %v1571 = vmax.f32 %v1325, 0.0
        %v1572 = vmax.f32 %v1503, 0.0
        %v1573 = vmax.f32 %v1328, 0.0
        %v1574 = vmax.f32 %v1506, 0.0
        %v1575 = vmax.f32 %v1330, 0.0
        %v1576 = vmax.f32 %v1508, 0.0
        %v1577 = vmax.f32 %v1333, 0.0
        %v1578 = vmax.f32 %v1511, 0.0
        %v1579 = vmax.f32 %v1335, 0.0
        %v1580 = vmax.f32 %v1513, 0.0
        %v1581 = vmax.f32 %v1338, 0.0
        %v1582 = vmax.f32 %v1516, 0.0
        %v1583 = vmax.f32 %v1340, 0.0
        %v1584 = vmax.f32 %v1518, 0.0
        %v1585 = vmax.f32 %v1343, 0.0
        %v1586 = vmax.f32 %v1521, 0.0
        %v1587 = vmax.f32 %v1345, 0.0
        %v1588 = vmax.f32 %v1523, 0.0
        %v1589 = vld [vmem:[%s4] sm:$0x3]
        %v1590 = vpack.c.bf16 %v1527, %v1525
        %v1591 = vpack.c.bf16 %v1528, %v1526
        %v1592 = vpack.c.bf16 %v1531, %v1529
        %v1593 = vpack.c.bf16 %v1532, %v1530
        %v1594 = vpack.c.bf16 %v1535, %v1533
        %v1595 = vpack.c.bf16 %v1536, %v1534
        %v1596 = vpack.c.bf16 %v1539, %v1537
        %v1597 = vpack.c.bf16 %v1540, %v1538
        %v1598 = vpack.c.bf16 %v1543, %v1541
        %v1599 = vpack.c.bf16 %v1544, %v1542
        %v1600 = vpack.c.bf16 %v1547, %v1545
        %v1601 = vpack.c.bf16 %v1548, %v1546
        %v1602 = vpack.c.bf16 %v1551, %v1549
        %v1603 = vpack.c.bf16 %v1552, %v1550
        %v1604 = vpack.c.bf16 %v1555, %v1553
        %v1605 = vpack.c.bf16 %v1556, %v1554
        %v1606 = vpack.c.bf16 %v1559, %v1557
        %v1607 = vpack.c.bf16 %v1560, %v1558
        %v1608 = vpack.c.bf16 %v1563, %v1561
        %v1609 = vpack.c.bf16 %v1564, %v1562
        %v1610 = vpack.c.bf16 %v1567, %v1565
        %v1611 = vpack.c.bf16 %v1568, %v1566
        %v1612 = vpack.c.bf16 %v1571, %v1569
        %v1613 = vpack.c.bf16 %v1572, %v1570
        %v1614 = vpack.c.bf16 %v1575, %v1573
        %v1615 = vpack.c.bf16 %v1576, %v1574
        %v1616 = vpack.c.bf16 %v1579, %v1577
        %v1617 = vpack.c.bf16 %v1580, %v1578
        %v1618 = vpack.c.bf16 %v1583, %v1581
        %v1619 = vpack.c.bf16 %v1584, %v1582
        %v1620 = vpack.c.bf16 %v1587, %v1585
        %v1621 = vpack.c.bf16 %v1588, %v1586
        %s1622 = sld [smem:[#allocation2]]
        %v1623 = vstv %s1622
        %1625 = vst [vmem:[#allocation1] ss:$9 sm:$0xff] %v1589
        %v1626 = vld [vmem:[#allocation1] sm:$0xff]
        %v1627 = vld [vmem:[#allocation1 + $0x9] sm:$0xff]
        %1630 = vmatpush.bf16.msra.mxu0 %v1604
        %1631 = vmatpush.bf16.msra.mxu0 %v1602
        %1632 = vmatpush.bf16.msra.mxu0 %v1600
        %1633 = vmatpush.bf16.msra.mxu0 %v1598
        %1634 = vmatpush.bf16.msra.mxu0 %v1596
        %1635 = vmatpush.bf16.msra.mxu0 %v1594
        %1636 = vmatpush.bf16.msra.mxu0 %v1592
        %1637 = vmatpush.bf16.msra.mxu0 %v1590
        %1638 = vmatmul.bf16.gmra.mxu0 %v1626
        %v1639 = vpop.f32.mrf.mxu0
        %v1640 = vadd.f32 %v1623, %v1639
        %v1641 = vpop.f32.mrf.mxu0
        %1642 = vdwg.mxu0
        %1643 = vmatpush.bf16.msra.mxu0 %v1620
        %1644 = vmatpush.bf16.msra.mxu0 %v1618
        %1645 = vmatpush.bf16.msra.mxu0 %v1616
        %1646 = vmatpush.bf16.msra.mxu0 %v1614
        %1647 = vmatpush.bf16.msra.mxu0 %v1612
        %1648 = vmatpush.bf16.msra.mxu0 %v1610
        %1649 = vmatpush.bf16.msra.mxu0 %v1608
        %1650 = vmatpush.bf16.msra.mxu0 %v1606
        %1651 = vmatmul.bf16.gmra.mxu0 %v1627
        %v1652 = vpop.f32.mrf.mxu0
        %v1653 = vadd.f32 %v1640, %v1652
        %v1654 = vpop.f32.mrf.mxu0
        %1655 = vdwg.mxu0
        %1656 = vmatpush.bf16.msra.mxu0 %v1605
        %1657 = vmatpush.bf16.msra.mxu0 %v1603
        %1658 = vmatpush.bf16.msra.mxu0 %v1601
        %1659 = vmatpush.bf16.msra.mxu0 %v1599
        %1660 = vmatpush.bf16.msra.mxu0 %v1597
        %1661 = vmatpush.bf16.msra.mxu0 %v1595
        %1662 = vmatpush.bf16.msra.mxu0 %v1593
        %1663 = vmatpush.bf16.msra.mxu0 %v1591
        %1664 = vmatmul.bf16.gmra.mxu0 %v1626
        %v1665 = vpop.f32.mrf.mxu0
        %v1666 = vadd.f32 %v1623, %v1665
        %v1667 = vpop.f32.mrf.mxu0
        %1668 = vdwg.mxu0
        %1669 = vmatpush.bf16.msra.mxu0 %v1621
        %1670 = vmatpush.bf16.msra.mxu0 %v1619
        %1671 = vmatpush.bf16.msra.mxu0 %v1617
        %1672 = vmatpush.bf16.msra.mxu0 %v1615
        %1673 = vmatpush.bf16.msra.mxu0 %v1613
        %1674 = vmatpush.bf16.msra.mxu0 %v1611
        %1675 = vmatpush.bf16.msra.mxu0 %v1609
        %1676 = vmatpush.bf16.msra.mxu0 %v1607
        %1677 = vmatmul.bf16.gmra.mxu0 %v1627
        %v1678 = vpop.f32.mrf.mxu0
        %v1679 = vadd.f32 %v1666, %v1678
        %v1680 = vpop.f32.mrf.mxu0
        %1681 = vdwg.mxu0
        %v1682 = vtanh.pop %v1653
        %v1683 = vtanh.pop %v1679
        %v1686 = vrot.slane %v1683, 7
        %vm1687 = vcmask 1040384
        %v1688 = vsel %vm1687, %v1682, %v1686
        %v1690 = vlaneseq
        %vm1691 = vcmp.ge.s32.totalorder %v1690, 0
        %vm1692 = vcmp.lt.s32.totalorder %v1690, 256
        %vm1693 = vmand %vm1691, %vm1692
        %1694 = vst.msk [vmem:[%s246] sm:$0x3] %vm1693, %v1688
        %s1695 = sand.u32 %s160, 1
        %s1696 = scalar_lea.sflag [#allocation4], %s1695
        %s1697 = sand.u32 %s160, 1
        %s1698 = smul.addr %s1697, 2
        %s1699 = scalar_lea.vmem [#allocation3], %s1698
        // Predicated region
        $region45: #{tpu_custom_call.1} parent=43 // pred_check
          %p1700 = pneg %p170
        $region46: #{tpu_custom_call.1} parent=43 // pred_check_branch
          %1702 = sbr.rel (%p1700) target = $region48
        $region47: #{tpu_custom_call.1} parent=43 // pred_region
          %s1703 = smul.u32 2, %s21
          %1705 = vsyncadd %s1696, 0
          %s1706 = scalar_lea.hbm %s6, %s1703
          %s1708 = sshll.u32 %s1699, 4
          %s1709 = int_to_ptr.vmem [resolvable:$true] %s1708
          %s1710 = sshll.u32 %s1706, 4
          %s1711 = int_to_ptr.hbm [resolvable:$true] %s1710
          %1713 = dma.vmem_to_hbm [thread:$0]  %s1709, 32, %s1711, %s1696
        $region48: #{tpu_custom_call.1} parent=43 // pred_fallthru
          _
      $region44: #{tpu_custom_call.1} parent=5 // pred_fallthru
        _
      %p1714 = scmp.le.s32.totalorder 2, %s16
      // Predicated region
      $region49: #{tpu_custom_call.1} parent=5 // pred_check
        %p1715 = pneg %p1714
      $region50: #{tpu_custom_call.1} parent=5 // pred_check_branch
        %1717 = sbr.rel (%p1715) target = $region52
      $region51: #{tpu_custom_call.1} parent=5 // pred_region
        %s1718 = ssub.s32 %s16, 2
        // Predicated region
        $region53: #{tpu_custom_call.1} parent=51 // pred_check
          %p1719 = pneg %p176
        $region54: #{tpu_custom_call.1} parent=51 // pred_check_branch
          %1721 = sbr.rel (%p1719) target = $region56
        $region55: #{tpu_custom_call.1} parent=51 // pred_region
          %s1722 = sand.u32 %s161, 1
          %s1723 = scalar_lea.sflag [#allocation4], %s1722
          %s1724 = sand.u32 %s161, 1
          %s1725 = smul.addr %s1724, 2
          %s1726 = scalar_lea.vmem [#allocation3], %s1725
          %1728 = dma.done %s1723, 32
        $region56: #{tpu_custom_call.1} parent=51 // pred_fallthru
          _
      $region52: #{tpu_custom_call.1} parent=5 // pred_fallthru
        _
    $region6: #{tpu_custom_call.1} parent=1 // loop_footer
      %s20 = sadd.s32 1, %s16
    $region7: #{tpu_custom_call.1} parent=1 // loop_footer_branch
      %15 = sbr.rel target = $region3
    $region8: #{tpu_custom_call.1} parent=1 // loop_exit
      _
    %1729 = vsyncpa [#allocation4], 1
    %s1730 = scalar_lea.sflag [#allocation4], 1
    %1731 = vsyncpa %s1730, 1

</llo_original>
